<compile_context>
chip_gen: v5e
topology: v5e:2x2
jax: 0.10.0
libtpu: 0.0.40
codegen_flags: <defaults>
</compile_context>

<pallas_src>
import functools

import numpy as np
import jax
import jax.numpy as jnp
from jax.experimental import pallas as pl
from jax.experimental.pallas import tpu as pltpu

BN_EPS = 1e-5  # PyTorch BatchNorm1d default eps
LANE = 128


def _round_up(x, m):
    return (x + m - 1) // m * m


def _ghost_bn(z, gamma, beta, cpg, cb):
    """Training-mode BatchNorm over each virtual-batch chunk, folded to one FMA.

    z: (cpg*cb, 2F) f32.  gamma/beta: (1, 2F) f32 (zero in padded lanes).
    """
    if cpg == 1:
        mean = jnp.mean(z, axis=0, keepdims=True)
        mean_sq = jnp.mean(z * z, axis=0, keepdims=True)
        var = mean_sq - mean * mean                 # biased variance
        a = gamma * jax.lax.rsqrt(var + BN_EPS)
        c = beta - mean * a
        return z * a + c
    f = z.shape[1]
    z3 = z.reshape(cpg, cb, f)
    mean = jnp.mean(z3, axis=1, keepdims=True)
    mean_sq = jnp.mean(z3 * z3, axis=1, keepdims=True)
    var = mean_sq - mean * mean
    a = gamma[None] * jax.lax.rsqrt(var + BN_EPS)   # (cpg, 1, 2F)
    c = beta[None] - mean * a
    return (z3 * a + c).reshape(cpg * cb, f)


def _ft_kernel(x_ref, w0_ref, wr_ref, p_ref, o_ref, *,
               n_blocks, first_no_residual, cpg, cb, od, scale):
    """Fused FeatureTransformer on one group of virtual-batch chunks.

    x_ref : (rows, inp_dim)  unpadded input activations
    w0_ref: (inp_dim, 2F)    bf16, block-0 weight  [W_val | W_gate]
    wr_ref: (max(n_blocks-1,1), F, 2F) bf16, remaining block weights (zero pad)
    p_ref : (n_blocks, 2, 2F) f32, rows: gamma, beta (zero in padded lanes)
    o_ref : (rows, od)
    """
    F = w0_ref.shape[-1] // 2
    rows = x_ref.shape[0]
    act = None
    act_b = x_ref[...].astype(jnp.bfloat16)         # bf16 into the MXU
    for blk in range(n_blocks):
        if blk == 0:
            z = jnp.dot(act_b, w0_ref[...], preferred_element_type=jnp.float32)
        else:
            z = jnp.dot(act.astype(jnp.bfloat16), wr_ref[blk - 1],
                        preferred_element_type=jnp.float32)
        prm = p_ref[blk]                             # (2, 2F)
        z = _ghost_bn(z, prm[0:1], prm[1:2], cpg, cb)
        zv = z[:, :F]                                # lane-tile-aligned slices
        zg = z[:, F:]
        glu = zv * (0.5 * jnp.tanh(0.5 * zg) + 0.5)  # sigmoid, single EUP push
        if blk == 0:
            if first_no_residual:
                act = glu                            # first shared GLU: no residual
            else:
                # no shared layers: module adds the input itself (needs inp_dim == od)
                x_f32 = x_ref[...].astype(jnp.float32)
                pad = F - x_f32.shape[1]
                if pad > 0:
                    x_f32 = jnp.concatenate(
                        [x_f32, jnp.zeros((rows, pad), jnp.float32)], axis=1)
                act = (x_f32 + glu) * scale
        else:
            act = (act + glu) * scale                # residual + sqrt(0.5) scaling
    o_ref[...] = act[:, :od].astype(o_ref.dtype)


def feature_transformer(x, shared_params, independ_params, *, vbs):
    """Pallas implementation of FeatureTransformer.forward (single fused kernel)."""
    scale = float(np.sqrt(0.5))
    params = list(shared_params) + list(independ_params)
    assert params, "need at least one GLU block"
    n_blocks = len(params)
    two_od = params[0]["w"].shape[1]
    od = two_od // 2
    B, inp_dim = x.shape

    # Lane-dense padded activation width (val half) -> 2F total per block.
    F = _round_up(od, LANE)

    # --- Stack + zero-pad weights / BN params on the host (numpy, one-time). ---
    # Bias is dropped: it cancels exactly with the training-mode batch-mean
    # subtraction of BatchNorm.
    w0_np = np.zeros((inp_dim, 2 * F), np.float32)
    w_np = np.asarray(params[0]["w"], np.float32)
    w0_np[:, :od] = w_np[:, :od]                     # value half at lane 0
    w0_np[:, F:F + od] = w_np[:, od:]                # gate half at lane F

    n_rest = max(n_blocks - 1, 1)
    wr_np = np.zeros((n_rest, F, 2 * F), np.float32)
    for i in range(1, n_blocks):
        w_np = np.asarray(params[i]["w"], np.float32)
        d_in = w_np.shape[0]
        wr_np[i - 1, :d_in, :od] = w_np[:, :od]
        wr_np[i - 1, :d_in, F:F + od] = w_np[:, od:]

    p_np = np.zeros((n_blocks, 2, 2 * F), np.float32)
    for i, p in enumerate(params):
        g = np.asarray(p["gamma"], np.float32)
        bt = np.asarray(p["beta"], np.float32)
        p_np[i, 0, :od] = g[:od]
        p_np[i, 0, F:F + od] = g[od:]
        p_np[i, 1, :od] = bt[:od]
        p_np[i, 1, F:F + od] = bt[od:]

    w0 = jnp.asarray(w0_np, jnp.bfloat16)
    w_rest = jnp.asarray(wr_np, jnp.bfloat16)
    p_stack = jnp.asarray(p_np, jnp.float32)

    # --- Ghost Batch Norm chunking (torch.chunk semantics for even splits). ---
    num_chunks = (B // vbs) if B > vbs else 1
    assert B % num_chunks == 0, "batch must split evenly into virtual batches"
    # TODO(synk): uneven torch.chunk splits (B not a multiple of vbs) not handled.
    cb = B // num_chunks

    # Several virtual batches per grid step so each step moves a big slab,
    # but keep >= 2 grid steps when possible so v7x's 2nd TensorCore is fed.
    target_rows = 4096
    cpg = max(1, min(num_chunks, max(1, target_rows // max(cb, 1))))
    if num_chunks >= 2:
        cpg = min(cpg, max(1, num_chunks // 2))
    if cpg > 1 and cb % 8 != 0:
        cpg = 1                                      # keep sublane-aligned reshapes
    while num_chunks % cpg:
        cpg -= 1
    rows = cpg * cb
    grid = (num_chunks // cpg,)

    kernel = functools.partial(
        _ft_kernel,
        n_blocks=n_blocks,
        first_no_residual=bool(len(shared_params) > 0),
        cpg=cpg, cb=cb, od=od, scale=scale)

    # --- VMEM budget: double-buffered x/out tiles, resident weights/params,
    # --- and in-kernel live temporaries (act, bf16 copy, z, BN temps, glu). ---
    itemsize = jnp.dtype(x.dtype).itemsize
    io_bytes = 2 * rows * inp_dim * itemsize + 2 * rows * od * itemsize
    wt_bytes = 2 * (w0.size + w_rest.size) * 2 + 2 * p_stack.size * 4
    live_bytes = 7 * rows * F * 4
    est = io_bytes + wt_bytes + live_bytes + (4 << 20)
    try:
        cap = int(pltpu.get_tpu_info().vmem_capacity_bytes)
    except Exception:
        cap = 64 << 20
    vmem_limit = int(min(max(est, 16 << 20), (cap * 85) // 100))

    def _build(single_buffer):
        def _res_spec(shape):
            imap = (lambda i: (0, 0)) if len(shape) == 2 else (lambda i: (0, 0, 0))
            if single_buffer:
                return pl.BlockSpec(shape, imap, pipeline_mode=pl.Buffered(1))
            return pl.BlockSpec(shape, imap)
        return pl.pallas_call(
            kernel,
            grid=grid,
            out_shape=jax.ShapeDtypeStruct((B, od), x.dtype),
            in_specs=[
                pl.BlockSpec((rows, inp_dim), lambda i: (i, 0)),   # x chunk group
                _res_spec(tuple(w0.shape)),                        # block-0 weight
                _res_spec(tuple(w_rest.shape)),                    # remaining weights
                _res_spec(tuple(p_stack.shape)),                   # BN params
            ],
            out_specs=pl.BlockSpec((rows, od), lambda i: (i, 0)),
            compiler_params=pltpu.CompilerParams(
                dimension_semantics=("parallel",),
                vmem_limit_bytes=vmem_limit),
        )

    args = (x, w0, w_rest, p_stack)
    try:
        out = _build(single_buffer=True)(*args)
    except Exception:
        # pipeline_mode=pl.Buffered(1) rejected on this jax version -> default buffering.
        out = _build(single_buffer=False)(*args)
    return out


def init_glu_params(key, d_in, out_dim):
    """Parameters matching GLU's shapes: Linear(d_in, 2*out_dim) + BN(2*out_dim)."""
    kw, kb, kg, kbt = jax.random.split(key, 4)
    bound = 1.0 / np.sqrt(d_in)
    two_od = 2 * out_dim
    return dict(
        w=jax.random.uniform(kw, (d_in, two_od), jnp.float32, -bound, bound),
        b=jax.random.uniform(kb, (two_od,), jnp.float32, -bound, bound),
        gamma=jnp.ones((two_od,), jnp.float32)
        + 0.1 * jax.random.normal(kg, (two_od,), jnp.float32),
        beta=0.1 * jax.random.normal(kbt, (two_od,), jnp.float32),
    )


# ---------------- pure-JAX f32 reference (keeps the bias; validates the
# ---------------- kernel's bias-drop / fused-BN / fused-RHS math) ----------------
def _glu_ref(x, res, p, scale, vbs):
    B = x.shape[0]
    num_chunks = (B // vbs) if B > vbs else 1
    od = p["w"].shape[1] // 2
    outs = []
    for xc, rc in zip(jnp.split(x, num_chunks, 0), jnp.split(res, num_chunks, 0)):
        z = xc @ p["w"] + p["b"]
        mean = jnp.mean(z, axis=0, keepdims=True)
        var = jnp.mean((z - mean) ** 2, axis=0, keepdims=True)
        z = (z - mean) / jnp.sqrt(var + BN_EPS) * p["gamma"] + p["beta"]
        glu = z[:, :od] * jax.nn.sigmoid(z[:, od:])
        outs.append((rc + glu) * scale)
    return jnp.concatenate(outs, 0)


def feature_transformer_ref(x, shared_params, independ_params, *, vbs):
    scale = float(np.sqrt(0.5))
    B = x.shape[0]
    if shared_params:
        p = shared_params[0]
        od = p["w"].shape[1] // 2
        x = _glu_ref(x, jnp.zeros((B, od), x.dtype), p, 1.0, vbs)
        for p in shared_params[1:]:
            x = _glu_ref(x, x, p, scale, vbs)
    for p in independ_params:
        x = _glu_ref(x, x, p, scale, vbs)
    return x


if __name__ == "__main__":
    # Small config: FeatureTransformer(inp_dim=16, out_dim=16, shared=[fc1, fc2],
    #                                  n_ind=2, vbs=1024), batch=8
    B, inp_dim, out_dim = 8, 16, 16
    n_shared, n_ind, vbs = 2, 2, 1024

    key = jax.random.PRNGKey(0)
    kx, *kparams = jax.random.split(key, 1 + n_shared + n_ind)
    x = jax.random.normal(kx, (B, inp_dim), jnp.float32)

    shared_params = [init_glu_params(kparams[0], inp_dim, out_dim)]
    for i in range(1, n_shared):
        shared_params.append(init_glu_params(kparams[i], out_dim, out_dim))
    independ_params = [
        init_glu_params(kparams[n_shared + i], out_dim, out_dim) for i in range(n_ind)
    ]

    out = feature_transformer(x, shared_params, independ_params, vbs=vbs)
    out = jax.block_until_ready(out)

    ref = feature_transformer_ref(x, shared_params, independ_params, vbs=vbs)
    # Tolerance loosened vs. the pure-f32 version: matmul inputs (x, act, W) are
    # now bf16 (f32 accumulation), per the performance review.
    np.testing.assert_allclose(np.asarray(out), np.asarray(ref), rtol=5e-2, atol=5e-2)

    print("KERNEL_OK")
</pallas_src>

<mosaic_0001>
module attributes {stable_mosaic.version = 11 : i64} {
  func.func @_ft_kernel(%arg0: i32, %arg1: memref<8x16xf32, #tpu.memory_space<vmem>>, %arg2: memref<16x256xbf16, #tpu.memory_space<vmem>>, %arg3: memref<3x128x256xbf16, #tpu.memory_space<vmem>>, %arg4: memref<4x2x256xf32, #tpu.memory_space<vmem>>, %arg5: memref<8x16xf32, #tpu.memory_space<vmem>>) attributes {dimension_semantics = [#tpu.dimension_semantics<parallel>], iteration_bounds = array<i64: 1>, scalar_prefetch = 0 : i64, scratch_operands = 0 : i64, tpu.core_type = #tpu.core_type<tc>, window_params = [{transform_indices = @transform_0, window_bounds = array<i64: 8, 16>}, {pipeline_mode = #tpu.pipeline_mode<synchronous>, transform_indices = @transform_1, window_bounds = array<i64: 16, 256>}, {pipeline_mode = #tpu.pipeline_mode<synchronous>, transform_indices = @transform_2, window_bounds = array<i64: 3, 128, 256>}, {pipeline_mode = #tpu.pipeline_mode<synchronous>, transform_indices = @transform_3, window_bounds = array<i64: 4, 2, 256>}, {transform_indices = @transform_4, window_bounds = array<i64: 8, 16>}]} {
    %c0 = arith.constant 0 : index
    %c0_0 = arith.constant 0 : index
    %0 = vector.load %arg1[%c0, %c0_0] : memref<8x16xf32, #tpu.memory_space<vmem>>, vector<8x16xf32>
    %1 = arith.truncf %0 : vector<8x16xf32> to vector<8x16xbf16>
    %c0_1 = arith.constant 0 : index
    %c0_2 = arith.constant 0 : index
    %2 = vector.load %arg2[%c0_1, %c0_2] : memref<16x256xbf16, #tpu.memory_space<vmem>>, vector<16x256xbf16>
    %cst = arith.constant dense<0.000000e+00> : vector<8x256xf32>
    %3 = tpu.matmul %1, %2, %cst {dimension_numbers = #tpu.dot_dimension_numbers<[1], [0], [0], [1], [0, 0, 1, 1], [], []>} : vector<8x16xbf16>, vector<16x256xbf16>, vector<8x256xf32> -> vector<8x256xf32>
    %c0_3 = arith.constant 0 : index
    %c0_4 = arith.constant 0 : index
    %c0_5 = arith.constant 0 : index
    %4 = vector.load %arg4[%c0_3, %c0_4, %c0_5] : memref<4x2x256xf32, #tpu.memory_space<vmem>>, vector<1x2x256xf32>
    %5 = vector.shape_cast %4 : vector<1x2x256xf32> to vector<2x256xf32>
    %6 = vector.extract_strided_slice %5 {offsets = [0, 0], sizes = [1, 256], strides = [1, 1]} : vector<2x256xf32> to vector<1x256xf32>
    %7 = vector.extract_strided_slice %5 {offsets = [1, 0], sizes = [1, 256], strides = [1, 1]} : vector<2x256xf32> to vector<1x256xf32>
    %cst_6 = arith.constant dense<0.000000e+00> : vector<256xf32>
    %8 = vector.multi_reduction <add>, %3, %cst_6 [0] : vector<8x256xf32> to vector<256xf32>
    %9 = vector.shape_cast %8 : vector<256xf32> to vector<1x256xf32>
    %cst_7 = arith.constant 8.000000e+00 : f32
    %10 = vector.broadcast %cst_7 : f32 to vector<1x256xf32>
    %11 = arith.divf %9, %10 : vector<1x256xf32>
    %12 = arith.mulf %3, %3 : vector<8x256xf32>
    %cst_8 = arith.constant dense<0.000000e+00> : vector<256xf32>
    %13 = vector.multi_reduction <add>, %12, %cst_8 [0] : vector<8x256xf32> to vector<256xf32>
    %14 = vector.shape_cast %13 : vector<256xf32> to vector<1x256xf32>
    %cst_9 = arith.constant 8.000000e+00 : f32
    %15 = vector.broadcast %cst_9 : f32 to vector<1x256xf32>
    %16 = arith.divf %14, %15 : vector<1x256xf32>
    %17 = arith.mulf %11, %11 : vector<1x256xf32>
    %18 = arith.subf %16, %17 : vector<1x256xf32>
    %cst_10 = arith.constant 9.99999974E-6 : f32
    %19 = vector.broadcast %cst_10 : f32 to vector<1x256xf32>
    %20 = arith.addf %18, %19 : vector<1x256xf32>
    %21 = math.rsqrt %20 : vector<1x256xf32>
    %22 = arith.mulf %6, %21 : vector<1x256xf32>
    %23 = arith.mulf %11, %22 : vector<1x256xf32>
    %24 = arith.subf %7, %23 : vector<1x256xf32>
    %25 = vector.broadcast %22 : vector<1x256xf32> to vector<8x256xf32>
    %26 = arith.mulf %3, %25 : vector<8x256xf32>
    %27 = vector.broadcast %24 : vector<1x256xf32> to vector<8x256xf32>
    %28 = arith.addf %26, %27 : vector<8x256xf32>
    %29 = vector.extract_strided_slice %28 {offsets = [0, 0], sizes = [8, 128], strides = [1, 1]} : vector<8x256xf32> to vector<8x128xf32>
    %30 = vector.extract_strided_slice %28 {offsets = [0, 128], sizes = [8, 128], strides = [1, 1]} : vector<8x256xf32> to vector<8x128xf32>
    %cst_11 = arith.constant 5.000000e-01 : f32
    %31 = vector.broadcast %cst_11 : f32 to vector<8x128xf32>
    %32 = arith.mulf %31, %30 : vector<8x128xf32>
    %33 = math.tanh %32 : vector<8x128xf32>
    %cst_12 = arith.constant 5.000000e-01 : f32
    %34 = vector.broadcast %cst_12 : f32 to vector<8x128xf32>
    %35 = arith.mulf %34, %33 : vector<8x128xf32>
    %cst_13 = arith.constant 5.000000e-01 : f32
    %36 = vector.broadcast %cst_13 : f32 to vector<8x128xf32>
    %37 = arith.addf %35, %36 : vector<8x128xf32>
    %38 = arith.mulf %29, %37 : vector<8x128xf32>
    %39 = arith.truncf %38 : vector<8x128xf32> to vector<8x128xbf16>
    %c0_14 = arith.constant 0 : index
    %c0_15 = arith.constant 0 : index
    %c0_16 = arith.constant 0 : index
    %40 = vector.load %arg3[%c0_14, %c0_15, %c0_16] : memref<3x128x256xbf16, #tpu.memory_space<vmem>>, vector<1x128x256xbf16>
    %41 = vector.shape_cast %40 : vector<1x128x256xbf16> to vector<128x256xbf16>
    %cst_17 = arith.constant dense<0.000000e+00> : vector<8x256xf32>
    %42 = tpu.matmul %39, %41, %cst_17 {dimension_numbers = #tpu.dot_dimension_numbers<[1], [0], [0], [1], [0, 0, 1, 1], [], []>} : vector<8x128xbf16>, vector<128x256xbf16>, vector<8x256xf32> -> vector<8x256xf32>
    %c1 = arith.constant 1 : index
    %c0_18 = arith.constant 0 : index
    %c0_19 = arith.constant 0 : index
    %43 = vector.load %arg4[%c1, %c0_18, %c0_19] : memref<4x2x256xf32, #tpu.memory_space<vmem>>, vector<1x2x256xf32>
    %44 = vector.shape_cast %43 : vector<1x2x256xf32> to vector<2x256xf32>
    %45 = vector.extract_strided_slice %44 {offsets = [0, 0], sizes = [1, 256], strides = [1, 1]} : vector<2x256xf32> to vector<1x256xf32>
    %46 = vector.extract_strided_slice %44 {offsets = [1, 0], sizes = [1, 256], strides = [1, 1]} : vector<2x256xf32> to vector<1x256xf32>
    %cst_20 = arith.constant dense<0.000000e+00> : vector<256xf32>
    %47 = vector.multi_reduction <add>, %42, %cst_20 [0] : vector<8x256xf32> to vector<256xf32>
    %48 = vector.shape_cast %47 : vector<256xf32> to vector<1x256xf32>
    %cst_21 = arith.constant 8.000000e+00 : f32
    %49 = vector.broadcast %cst_21 : f32 to vector<1x256xf32>
    %50 = arith.divf %48, %49 : vector<1x256xf32>
    %51 = arith.mulf %42, %42 : vector<8x256xf32>
    %cst_22 = arith.constant dense<0.000000e+00> : vector<256xf32>
    %52 = vector.multi_reduction <add>, %51, %cst_22 [0] : vector<8x256xf32> to vector<256xf32>
    %53 = vector.shape_cast %52 : vector<256xf32> to vector<1x256xf32>
    %cst_23 = arith.constant 8.000000e+00 : f32
    %54 = vector.broadcast %cst_23 : f32 to vector<1x256xf32>
    %55 = arith.divf %53, %54 : vector<1x256xf32>
    %56 = arith.mulf %50, %50 : vector<1x256xf32>
    %57 = arith.subf %55, %56 : vector<1x256xf32>
    %cst_24 = arith.constant 9.99999974E-6 : f32
    %58 = vector.broadcast %cst_24 : f32 to vector<1x256xf32>
    %59 = arith.addf %57, %58 : vector<1x256xf32>
    %60 = math.rsqrt %59 : vector<1x256xf32>
    %61 = arith.mulf %45, %60 : vector<1x256xf32>
    %62 = arith.mulf %50, %61 : vector<1x256xf32>
    %63 = arith.subf %46, %62 : vector<1x256xf32>
    %64 = vector.broadcast %61 : vector<1x256xf32> to vector<8x256xf32>
    %65 = arith.mulf %42, %64 : vector<8x256xf32>
    %66 = vector.broadcast %63 : vector<1x256xf32> to vector<8x256xf32>
    %67 = arith.addf %65, %66 : vector<8x256xf32>
    %68 = vector.extract_strided_slice %67 {offsets = [0, 0], sizes = [8, 128], strides = [1, 1]} : vector<8x256xf32> to vector<8x128xf32>
    %69 = vector.extract_strided_slice %67 {offsets = [0, 128], sizes = [8, 128], strides = [1, 1]} : vector<8x256xf32> to vector<8x128xf32>
    %cst_25 = arith.constant 5.000000e-01 : f32
    %70 = vector.broadcast %cst_25 : f32 to vector<8x128xf32>
    %71 = arith.mulf %70, %69 : vector<8x128xf32>
    %72 = math.tanh %71 : vector<8x128xf32>
    %cst_26 = arith.constant 5.000000e-01 : f32
    %73 = vector.broadcast %cst_26 : f32 to vector<8x128xf32>
    %74 = arith.mulf %73, %72 : vector<8x128xf32>
    %cst_27 = arith.constant 5.000000e-01 : f32
    %75 = vector.broadcast %cst_27 : f32 to vector<8x128xf32>
    %76 = arith.addf %74, %75 : vector<8x128xf32>
    %77 = arith.mulf %68, %76 : vector<8x128xf32>
    %78 = arith.addf %38, %77 : vector<8x128xf32>
    %cst_28 = arith.constant 0.707106769 : f32
    %79 = vector.broadcast %cst_28 : f32 to vector<8x128xf32>
    %80 = arith.mulf %78, %79 : vector<8x128xf32>
    %81 = arith.truncf %80 : vector<8x128xf32> to vector<8x128xbf16>
    %c1_29 = arith.constant 1 : index
    %c0_30 = arith.constant 0 : index
    %c0_31 = arith.constant 0 : index
    %82 = vector.load %arg3[%c1_29, %c0_30, %c0_31] : memref<3x128x256xbf16, #tpu.memory_space<vmem>>, vector<1x128x256xbf16>
    %83 = vector.shape_cast %82 : vector<1x128x256xbf16> to vector<128x256xbf16>
    %cst_32 = arith.constant dense<0.000000e+00> : vector<8x256xf32>
    %84 = tpu.matmul %81, %83, %cst_32 {dimension_numbers = #tpu.dot_dimension_numbers<[1], [0], [0], [1], [0, 0, 1, 1], [], []>} : vector<8x128xbf16>, vector<128x256xbf16>, vector<8x256xf32> -> vector<8x256xf32>
    %c2 = arith.constant 2 : index
    %c0_33 = arith.constant 0 : index
    %c0_34 = arith.constant 0 : index
    %85 = vector.load %arg4[%c2, %c0_33, %c0_34] : memref<4x2x256xf32, #tpu.memory_space<vmem>>, vector<1x2x256xf32>
    %86 = vector.shape_cast %85 : vector<1x2x256xf32> to vector<2x256xf32>
    %87 = vector.extract_strided_slice %86 {offsets = [0, 0], sizes = [1, 256], strides = [1, 1]} : vector<2x256xf32> to vector<1x256xf32>
    %88 = vector.extract_strided_slice %86 {offsets = [1, 0], sizes = [1, 256], strides = [1, 1]} : vector<2x256xf32> to vector<1x256xf32>
    %cst_35 = arith.constant dense<0.000000e+00> : vector<256xf32>
    %89 = vector.multi_reduction <add>, %84, %cst_35 [0] : vector<8x256xf32> to vector<256xf32>
    %90 = vector.shape_cast %89 : vector<256xf32> to vector<1x256xf32>
    %cst_36 = arith.constant 8.000000e+00 : f32
    %91 = vector.broadcast %cst_36 : f32 to vector<1x256xf32>
    %92 = arith.divf %90, %91 : vector<1x256xf32>
    %93 = arith.mulf %84, %84 : vector<8x256xf32>
    %cst_37 = arith.constant dense<0.000000e+00> : vector<256xf32>
    %94 = vector.multi_reduction <add>, %93, %cst_37 [0] : vector<8x256xf32> to vector<256xf32>
    %95 = vector.shape_cast %94 : vector<256xf32> to vector<1x256xf32>
    %cst_38 = arith.constant 8.000000e+00 : f32
    %96 = vector.broadcast %cst_38 : f32 to vector<1x256xf32>
    %97 = arith.divf %95, %96 : vector<1x256xf32>
    %98 = arith.mulf %92, %92 : vector<1x256xf32>
    %99 = arith.subf %97, %98 : vector<1x256xf32>
    %cst_39 = arith.constant 9.99999974E-6 : f32
    %100 = vector.broadcast %cst_39 : f32 to vector<1x256xf32>
    %101 = arith.addf %99, %100 : vector<1x256xf32>
    %102 = math.rsqrt %101 : vector<1x256xf32>
    %103 = arith.mulf %87, %102 : vector<1x256xf32>
    %104 = arith.mulf %92, %103 : vector<1x256xf32>
    %105 = arith.subf %88, %104 : vector<1x256xf32>
    %106 = vector.broadcast %103 : vector<1x256xf32> to vector<8x256xf32>
    %107 = arith.mulf %84, %106 : vector<8x256xf32>
    %108 = vector.broadcast %105 : vector<1x256xf32> to vector<8x256xf32>
    %109 = arith.addf %107, %108 : vector<8x256xf32>
    %110 = vector.extract_strided_slice %109 {offsets = [0, 0], sizes = [8, 128], strides = [1, 1]} : vector<8x256xf32> to vector<8x128xf32>
    %111 = vector.extract_strided_slice %109 {offsets = [0, 128], sizes = [8, 128], strides = [1, 1]} : vector<8x256xf32> to vector<8x128xf32>
    %cst_40 = arith.constant 5.000000e-01 : f32
    %112 = vector.broadcast %cst_40 : f32 to vector<8x128xf32>
    %113 = arith.mulf %112, %111 : vector<8x128xf32>
    %114 = math.tanh %113 : vector<8x128xf32>
    %cst_41 = arith.constant 5.000000e-01 : f32
    %115 = vector.broadcast %cst_41 : f32 to vector<8x128xf32>
    %116 = arith.mulf %115, %114 : vector<8x128xf32>
    %cst_42 = arith.constant 5.000000e-01 : f32
    %117 = vector.broadcast %cst_42 : f32 to vector<8x128xf32>
    %118 = arith.addf %116, %117 : vector<8x128xf32>
    %119 = arith.mulf %110, %118 : vector<8x128xf32>
    %120 = arith.addf %80, %119 : vector<8x128xf32>
    %cst_43 = arith.constant 0.707106769 : f32
    %121 = vector.broadcast %cst_43 : f32 to vector<8x128xf32>
    %122 = arith.mulf %120, %121 : vector<8x128xf32>
    %123 = arith.truncf %122 : vector<8x128xf32> to vector<8x128xbf16>
    %c2_44 = arith.constant 2 : index
    %c0_45 = arith.constant 0 : index
    %c0_46 = arith.constant 0 : index
    %124 = vector.load %arg3[%c2_44, %c0_45, %c0_46] : memref<3x128x256xbf16, #tpu.memory_space<vmem>>, vector<1x128x256xbf16>
    %125 = vector.shape_cast %124 : vector<1x128x256xbf16> to vector<128x256xbf16>
    %cst_47 = arith.constant dense<0.000000e+00> : vector<8x256xf32>
    %126 = tpu.matmul %123, %125, %cst_47 {dimension_numbers = #tpu.dot_dimension_numbers<[1], [0], [0], [1], [0, 0, 1, 1], [], []>} : vector<8x128xbf16>, vector<128x256xbf16>, vector<8x256xf32> -> vector<8x256xf32>
    %c3 = arith.constant 3 : index
    %c0_48 = arith.constant 0 : index
    %c0_49 = arith.constant 0 : index
    %127 = vector.load %arg4[%c3, %c0_48, %c0_49] : memref<4x2x256xf32, #tpu.memory_space<vmem>>, vector<1x2x256xf32>
    %128 = vector.shape_cast %127 : vector<1x2x256xf32> to vector<2x256xf32>
    %129 = vector.extract_strided_slice %128 {offsets = [0, 0], sizes = [1, 256], strides = [1, 1]} : vector<2x256xf32> to vector<1x256xf32>
    %130 = vector.extract_strided_slice %128 {offsets = [1, 0], sizes = [1, 256], strides = [1, 1]} : vector<2x256xf32> to vector<1x256xf32>
    %cst_50 = arith.constant dense<0.000000e+00> : vector<256xf32>
    %131 = vector.multi_reduction <add>, %126, %cst_50 [0] : vector<8x256xf32> to vector<256xf32>
    %132 = vector.shape_cast %131 : vector<256xf32> to vector<1x256xf32>
    %cst_51 = arith.constant 8.000000e+00 : f32
    %133 = vector.broadcast %cst_51 : f32 to vector<1x256xf32>
    %134 = arith.divf %132, %133 : vector<1x256xf32>
    %135 = arith.mulf %126, %126 : vector<8x256xf32>
    %cst_52 = arith.constant dense<0.000000e+00> : vector<256xf32>
    %136 = vector.multi_reduction <add>, %135, %cst_52 [0] : vector<8x256xf32> to vector<256xf32>
    %137 = vector.shape_cast %136 : vector<256xf32> to vector<1x256xf32>
    %cst_53 = arith.constant 8.000000e+00 : f32
    %138 = vector.broadcast %cst_53 : f32 to vector<1x256xf32>
    %139 = arith.divf %137, %138 : vector<1x256xf32>
    %140 = arith.mulf %134, %134 : vector<1x256xf32>
    %141 = arith.subf %139, %140 : vector<1x256xf32>
    %cst_54 = arith.constant 9.99999974E-6 : f32
    %142 = vector.broadcast %cst_54 : f32 to vector<1x256xf32>
    %143 = arith.addf %141, %142 : vector<1x256xf32>
    %144 = math.rsqrt %143 : vector<1x256xf32>
    %145 = arith.mulf %129, %144 : vector<1x256xf32>
    %146 = arith.mulf %134, %145 : vector<1x256xf32>
    %147 = arith.subf %130, %146 : vector<1x256xf32>
    %148 = vector.broadcast %145 : vector<1x256xf32> to vector<8x256xf32>
    %149 = arith.mulf %126, %148 : vector<8x256xf32>
    %150 = vector.broadcast %147 : vector<1x256xf32> to vector<8x256xf32>
    %151 = arith.addf %149, %150 : vector<8x256xf32>
    %152 = vector.extract_strided_slice %151 {offsets = [0, 0], sizes = [8, 128], strides = [1, 1]} : vector<8x256xf32> to vector<8x128xf32>
    %153 = vector.extract_strided_slice %151 {offsets = [0, 128], sizes = [8, 128], strides = [1, 1]} : vector<8x256xf32> to vector<8x128xf32>
    %cst_55 = arith.constant 5.000000e-01 : f32
    %154 = vector.broadcast %cst_55 : f32 to vector<8x128xf32>
    %155 = arith.mulf %154, %153 : vector<8x128xf32>
    %156 = math.tanh %155 : vector<8x128xf32>
    %cst_56 = arith.constant 5.000000e-01 : f32
    %157 = vector.broadcast %cst_56 : f32 to vector<8x128xf32>
    %158 = arith.mulf %157, %156 : vector<8x128xf32>
    %cst_57 = arith.constant 5.000000e-01 : f32
    %159 = vector.broadcast %cst_57 : f32 to vector<8x128xf32>
    %160 = arith.addf %158, %159 : vector<8x128xf32>
    %161 = arith.mulf %152, %160 : vector<8x128xf32>
    %162 = arith.addf %122, %161 : vector<8x128xf32>
    %cst_58 = arith.constant 0.707106769 : f32
    %163 = vector.broadcast %cst_58 : f32 to vector<8x128xf32>
    %164 = arith.mulf %162, %163 : vector<8x128xf32>
    %165 = vector.extract_strided_slice %164 {offsets = [0, 0], sizes = [8, 16], strides = [1, 1]} : vector<8x128xf32> to vector<8x16xf32>
    %c0_59 = arith.constant 0 : index
    %c0_60 = arith.constant 0 : index
    %166 = vector.load %arg5[%c0_59, %c0_60] : memref<8x16xf32, #tpu.memory_space<vmem>>, vector<8x16xf32>
    tpu.vector_store %arg5[%c0_59, %c0_60], %165 {strides = array<i32>} : memref<8x16xf32, #tpu.memory_space<vmem>>, vector<8x16xf32>,
    return
  }
  func.func @transform_0(%arg0: i32) -> (i32, i32) {
    %c0_i32 = arith.constant 0 : i32
    %c0_i32_0 = arith.constant 0 : i32
    return %arg0, %c0_i32 : i32, i32
  }
  func.func @transform_1(%arg0: i32) -> (i32, i32) {
    %c0_i32 = arith.constant 0 : i32
    %c0_i32_0 = arith.constant 0 : i32
    %c0_i32_1 = arith.constant 0 : i32
    return %c0_i32, %c0_i32_0 : i32, i32
  }
  func.func @transform_2(%arg0: i32) -> (i32, i32, i32) {
    %c0_i32 = arith.constant 0 : i32
    %c0_i32_0 = arith.constant 0 : i32
    %c0_i32_1 = arith.constant 0 : i32
    %c0_i32_2 = arith.constant 0 : i32
    return %c0_i32, %c0_i32_0, %c0_i32_1 : i32, i32, i32
  }
  func.func @transform_3(%arg0: i32) -> (i32, i32, i32) {
    %c0_i32 = arith.constant 0 : i32
    %c0_i32_0 = arith.constant 0 : i32
    %c0_i32_1 = arith.constant 0 : i32
    %c0_i32_2 = arith.constant 0 : i32
    return %c0_i32, %c0_i32_0, %c0_i32_1 : i32, i32, i32
  }
  func.func @transform_4(%arg0: i32) -> (i32, i32) {
    %c0_i32 = arith.constant 0 : i32
    %c0_i32_0 = arith.constant 0 : i32
    return %arg0, %c0_i32 : i32, i32
  }
}

module attributes {stable_mosaic.version = 11 : i64} {
  func.func @_ft_kernel(%arg0: i32, %arg1: memref<8x16xf32, #tpu.memory_space<vmem>>, %arg2: memref<16x256xbf16, #tpu.memory_space<vmem>>, %arg3: memref<3x128x256xbf16, #tpu.memory_space<vmem>>, %arg4: memref<4x2x256xf32, #tpu.memory_space<vmem>>, %arg5: memref<8x16xf32, #tpu.memory_space<vmem>>) attributes {dimension_semantics = [#tpu.dimension_semantics<parallel>], iteration_bounds = array<i64: 1>, scalar_prefetch = 0 : i64, scratch_operands = 0 : i64, tpu.core_type = #tpu.core_type<tc>, window_params = [{transform_indices = @transform_0, window_bounds = array<i64: 8, 16>}, {pipeline_mode = #tpu.pipeline_mode<synchronous>, transform_indices = @transform_1, window_bounds = array<i64: 16, 256>}, {pipeline_mode = #tpu.pipeline_mode<synchronous>, transform_indices = @transform_2, window_bounds = array<i64: 3, 128, 256>}, {pipeline_mode = #tpu.pipeline_mode<synchronous>, transform_indices = @transform_3, window_bounds = array<i64: 4, 2, 256>}, {transform_indices = @transform_4, window_bounds = array<i64: 8, 16>}]} {
    %c0 = arith.constant 0 : index
    %c0_0 = arith.constant 0 : index
    %0 = vector.load %arg1[%c0, %c0_0] : memref<8x16xf32, #tpu.memory_space<vmem>>, vector<8x16xf32>
    %1 = arith.truncf %0 : vector<8x16xf32> to vector<8x16xbf16>
    %c0_1 = arith.constant 0 : index
    %c0_2 = arith.constant 0 : index
    %2 = vector.load %arg2[%c0_1, %c0_2] : memref<16x256xbf16, #tpu.memory_space<vmem>>, vector<16x256xbf16>
    %cst = arith.constant dense<0.000000e+00> : vector<8x256xf32>
    %3 = tpu.matmul %1, %2, %cst {dimension_numbers = #tpu.dot_dimension_numbers<[1], [0], [0], [1], [0, 0, 1, 1], [], []>} : vector<8x16xbf16>, vector<16x256xbf16>, vector<8x256xf32> -> vector<8x256xf32>
    %c0_3 = arith.constant 0 : index
    %c0_4 = arith.constant 0 : index
    %c0_5 = arith.constant 0 : index
    %4 = vector.load %arg4[%c0_3, %c0_4, %c0_5] : memref<4x2x256xf32, #tpu.memory_space<vmem>>, vector<1x2x256xf32>
    %5 = vector.shape_cast %4 : vector<1x2x256xf32> to vector<2x256xf32>
    %6 = vector.extract_strided_slice %5 {offsets = [0, 0], sizes = [1, 256], strides = [1, 1]} : vector<2x256xf32> to vector<1x256xf32>
    %7 = vector.extract_strided_slice %5 {offsets = [1, 0], sizes = [1, 256], strides = [1, 1]} : vector<2x256xf32> to vector<1x256xf32>
    %cst_6 = arith.constant dense<0.000000e+00> : vector<256xf32>
    %8 = vector.multi_reduction <add>, %3, %cst_6 [0] : vector<8x256xf32> to vector<256xf32>
    %9 = vector.shape_cast %8 : vector<256xf32> to vector<1x256xf32>
    %cst_7 = arith.constant 8.000000e+00 : f32
    %10 = vector.broadcast %cst_7 : f32 to vector<1x256xf32>
    %11 = arith.divf %9, %10 : vector<1x256xf32>
    %12 = arith.mulf %3, %3 : vector<8x256xf32>
    %cst_8 = arith.constant dense<0.000000e+00> : vector<256xf32>
    %13 = vector.multi_reduction <add>, %12, %cst_8 [0] : vector<8x256xf32> to vector<256xf32>
    %14 = vector.shape_cast %13 : vector<256xf32> to vector<1x256xf32>
    %cst_9 = arith.constant 8.000000e+00 : f32
    %15 = vector.broadcast %cst_9 : f32 to vector<1x256xf32>
    %16 = arith.divf %14, %15 : vector<1x256xf32>
    %17 = arith.mulf %11, %11 : vector<1x256xf32>
    %18 = arith.subf %16, %17 : vector<1x256xf32>
    %cst_10 = arith.constant 9.99999974E-6 : f32
    %19 = vector.broadcast %cst_10 : f32 to vector<1x256xf32>
    %20 = arith.addf %18, %19 : vector<1x256xf32>
    %21 = math.rsqrt %20 : vector<1x256xf32>
    %22 = arith.mulf %6, %21 : vector<1x256xf32>
    %23 = arith.mulf %11, %22 : vector<1x256xf32>
    %24 = arith.subf %7, %23 : vector<1x256xf32>
    %25 = vector.broadcast %22 : vector<1x256xf32> to vector<8x256xf32>
    %26 = arith.mulf %3, %25 : vector<8x256xf32>
    %27 = vector.broadcast %24 : vector<1x256xf32> to vector<8x256xf32>
    %28 = arith.addf %26, %27 : vector<8x256xf32>
    %29 = vector.extract_strided_slice %28 {offsets = [0, 0], sizes = [8, 128], strides = [1, 1]} : vector<8x256xf32> to vector<8x128xf32>
    %30 = vector.extract_strided_slice %28 {offsets = [0, 128], sizes = [8, 128], strides = [1, 1]} : vector<8x256xf32> to vector<8x128xf32>
    %cst_11 = arith.constant 5.000000e-01 : f32
    %31 = vector.broadcast %cst_11 : f32 to vector<8x128xf32>
    %32 = arith.mulf %31, %30 : vector<8x128xf32>
    %33 = math.tanh %32 : vector<8x128xf32>
    %cst_12 = arith.constant 5.000000e-01 : f32
    %34 = vector.broadcast %cst_12 : f32 to vector<8x128xf32>
    %35 = arith.mulf %34, %33 : vector<8x128xf32>
    %cst_13 = arith.constant 5.000000e-01 : f32
    %36 = vector.broadcast %cst_13 : f32 to vector<8x128xf32>
    %37 = arith.addf %35, %36 : vector<8x128xf32>
    %38 = arith.mulf %29, %37 : vector<8x128xf32>
    %39 = arith.truncf %38 : vector<8x128xf32> to vector<8x128xbf16>
    %c0_14 = arith.constant 0 : index
    %c0_15 = arith.constant 0 : index
    %c0_16 = arith.constant 0 : index
    %40 = vector.load %arg3[%c0_14, %c0_15, %c0_16] : memref<3x128x256xbf16, #tpu.memory_space<vmem>>, vector<1x128x256xbf16>
    %41 = vector.shape_cast %40 : vector<1x128x256xbf16> to vector<128x256xbf16>
    %cst_17 = arith.constant dense<0.000000e+00> : vector<8x256xf32>
    %42 = tpu.matmul %39, %41, %cst_17 {dimension_numbers = #tpu.dot_dimension_numbers<[1], [0], [0], [1], [0, 0, 1, 1], [], []>} : vector<8x128xbf16>, vector<128x256xbf16>, vector<8x256xf32> -> vector<8x256xf32>
    %c1 = arith.constant 1 : index
    %c0_18 = arith.constant 0 : index
    %c0_19 = arith.constant 0 : index
    %43 = vector.load %arg4[%c1, %c0_18, %c0_19] : memref<4x2x256xf32, #tpu.memory_space<vmem>>, vector<1x2x256xf32>
    %44 = vector.shape_cast %43 : vector<1x2x256xf32> to vector<2x256xf32>
    %45 = vector.extract_strided_slice %44 {offsets = [0, 0], sizes = [1, 256], strides = [1, 1]} : vector<2x256xf32> to vector<1x256xf32>
    %46 = vector.extract_strided_slice %44 {offsets = [1, 0], sizes = [1, 256], strides = [1, 1]} : vector<2x256xf32> to vector<1x256xf32>
    %cst_20 = arith.constant dense<0.000000e+00> : vector<256xf32>
    %47 = vector.multi_reduction <add>, %42, %cst_20 [0] : vector<8x256xf32> to vector<256xf32>
    %48 = vector.shape_cast %47 : vector<256xf32> to vector<1x256xf32>
    %cst_21 = arith.constant 8.000000e+00 : f32
    %49 = vector.broadcast %cst_21 : f32 to vector<1x256xf32>
    %50 = arith.divf %48, %49 : vector<1x256xf32>
    %51 = arith.mulf %42, %42 : vector<8x256xf32>
    %cst_22 = arith.constant dense<0.000000e+00> : vector<256xf32>
    %52 = vector.multi_reduction <add>, %51, %cst_22 [0] : vector<8x256xf32> to vector<256xf32>
    %53 = vector.shape_cast %52 : vector<256xf32> to vector<1x256xf32>
    %cst_23 = arith.constant 8.000000e+00 : f32
    %54 = vector.broadcast %cst_23 : f32 to vector<1x256xf32>
    %55 = arith.divf %53, %54 : vector<1x256xf32>
    %56 = arith.mulf %50, %50 : vector<1x256xf32>
    %57 = arith.subf %55, %56 : vector<1x256xf32>
    %cst_24 = arith.constant 9.99999974E-6 : f32
    %58 = vector.broadcast %cst_24 : f32 to vector<1x256xf32>
    %59 = arith.addf %57, %58 : vector<1x256xf32>
    %60 = math.rsqrt %59 : vector<1x256xf32>
    %61 = arith.mulf %45, %60 : vector<1x256xf32>
    %62 = arith.mulf %50, %61 : vector<1x256xf32>
    %63 = arith.subf %46, %62 : vector<1x256xf32>
    %64 = vector.broadcast %61 : vector<1x256xf32> to vector<8x256xf32>
    %65 = arith.mulf %42, %64 : vector<8x256xf32>
    %66 = vector.broadcast %63 : vector<1x256xf32> to vector<8x256xf32>
    %67 = arith.addf %65, %66 : vector<8x256xf32>
    %68 = vector.extract_strided_slice %67 {offsets = [0, 0], sizes = [8, 128], strides = [1, 1]} : vector<8x256xf32> to vector<8x128xf32>
    %69 = vector.extract_strided_slice %67 {offsets = [0, 128], sizes = [8, 128], strides = [1, 1]} : vector<8x256xf32> to vector<8x128xf32>
    %cst_25 = arith.constant 5.000000e-01 : f32
    %70 = vector.broadcast %cst_25 : f32 to vector<8x128xf32>
    %71 = arith.mulf %70, %69 : vector<8x128xf32>
    %72 = math.tanh %71 : vector<8x128xf32>
    %cst_26 = arith.constant 5.000000e-01 : f32
    %73 = vector.broadcast %cst_26 : f32 to vector<8x128xf32>
    %74 = arith.mulf %73, %72 : vector<8x128xf32>
    %cst_27 = arith.constant 5.000000e-01 : f32
    %75 = vector.broadcast %cst_27 : f32 to vector<8x128xf32>
    %76 = arith.addf %74, %75 : vector<8x128xf32>
    %77 = arith.mulf %68, %76 : vector<8x128xf32>
    %78 = arith.addf %38, %77 : vector<8x128xf32>
    %cst_28 = arith.constant 0.707106769 : f32
    %79 = vector.broadcast %cst_28 : f32 to vector<8x128xf32>
    %80 = arith.mulf %78, %79 : vector<8x128xf32>
    %81 = arith.truncf %80 : vector<8x128xf32> to vector<8x128xbf16>
    %c1_29 = arith.constant 1 : index
    %c0_30 = arith.constant 0 : index
    %c0_31 = arith.constant 0 : index
    %82 = vector.load %arg3[%c1_29, %c0_30, %c0_31] : memref<3x128x256xbf16, #tpu.memory_space<vmem>>, vector<1x128x256xbf16>
    %83 = vector.shape_cast %82 : vector<1x128x256xbf16> to vector<128x256xbf16>
    %cst_32 = arith.constant dense<0.000000e+00> : vector<8x256xf32>
    %84 = tpu.matmul %81, %83, %cst_32 {dimension_numbers = #tpu.dot_dimension_numbers<[1], [0], [0], [1], [0, 0, 1, 1], [], []>} : vector<8x128xbf16>, vector<128x256xbf16>, vector<8x256xf32> -> vector<8x256xf32>
    %c2 = arith.constant 2 : index
    %c0_33 = arith.constant 0 : index
    %c0_34 = arith.constant 0 : index
    %85 = vector.load %arg4[%c2, %c0_33, %c0_34] : memref<4x2x256xf32, #tpu.memory_space<vmem>>, vector<1x2x256xf32>
    %86 = vector.shape_cast %85 : vector<1x2x256xf32> to vector<2x256xf32>
    %87 = vector.extract_strided_slice %86 {offsets = [0, 0], sizes = [1, 256], strides = [1, 1]} : vector<2x256xf32> to vector<1x256xf32>
    %88 = vector.extract_strided_slice %86 {offsets = [1, 0], sizes = [1, 256], strides = [1, 1]} : vector<2x256xf32> to vector<1x256xf32>
    %cst_35 = arith.constant dense<0.000000e+00> : vector<256xf32>
    %89 = vector.multi_reduction <add>, %84, %cst_35 [0] : vector<8x256xf32> to vector<256xf32>
    %90 = vector.shape_cast %89 : vector<256xf32> to vector<1x256xf32>
    %cst_36 = arith.constant 8.000000e+00 : f32
    %91 = vector.broadcast %cst_36 : f32 to vector<1x256xf32>
    %92 = arith.divf %90, %91 : vector<1x256xf32>
    %93 = arith.mulf %84, %84 : vector<8x256xf32>
    %cst_37 = arith.constant dense<0.000000e+00> : vector<256xf32>
    %94 = vector.multi_reduction <add>, %93, %cst_37 [0] : vector<8x256xf32> to vector<256xf32>
    %95 = vector.shape_cast %94 : vector<256xf32> to vector<1x256xf32>
    %cst_38 = arith.constant 8.000000e+00 : f32
    %96 = vector.broadcast %cst_38 : f32 to vector<1x256xf32>
    %97 = arith.divf %95, %96 : vector<1x256xf32>
    %98 = arith.mulf %92, %92 : vector<1x256xf32>
    %99 = arith.subf %97, %98 : vector<1x256xf32>
    %cst_39 = arith.constant 9.99999974E-6 : f32
    %100 = vector.broadcast %cst_39 : f32 to vector<1x256xf32>
    %101 = arith.addf %99, %100 : vector<1x256xf32>
    %102 = math.rsqrt %101 : vector<1x256xf32>
    %103 = arith.mulf %87, %102 : vector<1x256xf32>
    %104 = arith.mulf %92, %103 : vector<1x256xf32>
    %105 = arith.subf %88, %104 : vector<1x256xf32>
    %106 = vector.broadcast %103 : vector<1x256xf32> to vector<8x256xf32>
    %107 = arith.mulf %84, %106 : vector<8x256xf32>
    %108 = vector.broadcast %105 : vector<1x256xf32> to vector<8x256xf32>
    %109 = arith.addf %107, %108 : vector<8x256xf32>
    %110 = vector.extract_strided_slice %109 {offsets = [0, 0], sizes = [8, 128], strides = [1, 1]} : vector<8x256xf32> to vector<8x128xf32>
    %111 = vector.extract_strided_slice %109 {offsets = [0, 128], sizes = [8, 128], strides = [1, 1]} : vector<8x256xf32> to vector<8x128xf32>
    %cst_40 = arith.constant 5.000000e-01 : f32
    %112 = vector.broadcast %cst_40 : f32 to vector<8x128xf32>
    %113 = arith.mulf %112, %111 : vector<8x128xf32>
    %114 = math.tanh %113 : vector<8x128xf32>
    %cst_41 = arith.constant 5.000000e-01 : f32
    %115 = vector.broadcast %cst_41 : f32 to vector<8x128xf32>
    %116 = arith.mulf %115, %114 : vector<8x128xf32>
    %cst_42 = arith.constant 5.000000e-01 : f32
    %117 = vector.broadcast %cst_42 : f32 to vector<8x128xf32>
    %118 = arith.addf %116, %117 : vector<8x128xf32>
    %119 = arith.mulf %110, %118 : vector<8x128xf32>
    %120 = arith.addf %80, %119 : vector<8x128xf32>
    %cst_43 = arith.constant 0.707106769 : f32
    %121 = vector.broadcast %cst_43 : f32 to vector<8x128xf32>
    %122 = arith.mulf %120, %121 : vector<8x128xf32>
    %123 = arith.truncf %122 : vector<8x128xf32> to vector<8x128xbf16>
    %c2_44 = arith.constant 2 : index
    %c0_45 = arith.constant 0 : index
    %c0_46 = arith.constant 0 : index
    %124 = vector.load %arg3[%c2_44, %c0_45, %c0_46] : memref<3x128x256xbf16, #tpu.memory_space<vmem>>, vector<1x128x256xbf16>
    %125 = vector.shape_cast %124 : vector<1x128x256xbf16> to vector<128x256xbf16>
    %cst_47 = arith.constant dense<0.000000e+00> : vector<8x256xf32>
    %126 = tpu.matmul %123, %125, %cst_47 {dimension_numbers = #tpu.dot_dimension_numbers<[1], [0], [0], [1], [0, 0, 1, 1], [], []>} : vector<8x128xbf16>, vector<128x256xbf16>, vector<8x256xf32> -> vector<8x256xf32>
    %c3 = arith.constant 3 : index
    %c0_48 = arith.constant 0 : index
    %c0_49 = arith.constant 0 : index
    %127 = vector.load %arg4[%c3, %c0_48, %c0_49] : memref<4x2x256xf32, #tpu.memory_space<vmem>>, vector<1x2x256xf32>
    %128 = vector.shape_cast %127 : vector<1x2x256xf32> to vector<2x256xf32>
    %129 = vector.extract_strided_slice %128 {offsets = [0, 0], sizes = [1, 256], strides = [1, 1]} : vector<2x256xf32> to vector<1x256xf32>
    %130 = vector.extract_strided_slice %128 {offsets = [1, 0], sizes = [1, 256], strides = [1, 1]} : vector<2x256xf32> to vector<1x256xf32>
    %cst_50 = arith.constant dense<0.000000e+00> : vector<256xf32>
    %131 = vector.multi_reduction <add>, %126, %cst_50 [0] : vector<8x256xf32> to vector<256xf32>
    %132 = vector.shape_cast %131 : vector<256xf32> to vector<1x256xf32>
    %cst_51 = arith.constant 8.000000e+00 : f32
    %133 = vector.broadcast %cst_51 : f32 to vector<1x256xf32>
    %134 = arith.divf %132, %133 : vector<1x256xf32>
    %135 = arith.mulf %126, %126 : vector<8x256xf32>
    %cst_52 = arith.constant dense<0.000000e+00> : vector<256xf32>
    %136 = vector.multi_reduction <add>, %135, %cst_52 [0] : vector<8x256xf32> to vector<256xf32>
    %137 = vector.shape_cast %136 : vector<256xf32> to vector<1x256xf32>
    %cst_53 = arith.constant 8.000000e+00 : f32
    %138 = vector.broadcast %cst_53 : f32 to vector<1x256xf32>
    %139 = arith.divf %137, %138 : vector<1x256xf32>
    %140 = arith.mulf %134, %134 : vector<1x256xf32>
    %141 = arith.subf %139, %140 : vector<1x256xf32>
    %cst_54 = arith.constant 9.99999974E-6 : f32
    %142 = vector.broadcast %cst_54 : f32 to vector<1x256xf32>
    %143 = arith.addf %141, %142 : vector<1x256xf32>
    %144 = math.rsqrt %143 : vector<1x256xf32>
    %145 = arith.mulf %129, %144 : vector<1x256xf32>
    %146 = arith.mulf %134, %145 : vector<1x256xf32>
    %147 = arith.subf %130, %146 : vector<1x256xf32>
    %148 = vector.broadcast %145 : vector<1x256xf32> to vector<8x256xf32>
    %149 = arith.mulf %126, %148 : vector<8x256xf32>
    %150 = vector.broadcast %147 : vector<1x256xf32> to vector<8x256xf32>
    %151 = arith.addf %149, %150 : vector<8x256xf32>
    %152 = vector.extract_strided_slice %151 {offsets = [0, 0], sizes = [8, 128], strides = [1, 1]} : vector<8x256xf32> to vector<8x128xf32>
    %153 = vector.extract_strided_slice %151 {offsets = [0, 128], sizes = [8, 128], strides = [1, 1]} : vector<8x256xf32> to vector<8x128xf32>
    %cst_55 = arith.constant 5.000000e-01 : f32
    %154 = vector.broadcast %cst_55 : f32 to vector<8x128xf32>
    %155 = arith.mulf %154, %153 : vector<8x128xf32>
    %156 = math.tanh %155 : vector<8x128xf32>
    %cst_56 = arith.constant 5.000000e-01 : f32
    %157 = vector.broadcast %cst_56 : f32 to vector<8x128xf32>
    %158 = arith.mulf %157, %156 : vector<8x128xf32>
    %cst_57 = arith.constant 5.000000e-01 : f32
    %159 = vector.broadcast %cst_57 : f32 to vector<8x128xf32>
    %160 = arith.addf %158, %159 : vector<8x128xf32>
    %161 = arith.mulf %152, %160 : vector<8x128xf32>
    %162 = arith.addf %122, %161 : vector<8x128xf32>
    %cst_58 = arith.constant 0.707106769 : f32
    %163 = vector.broadcast %cst_58 : f32 to vector<8x128xf32>
    %164 = arith.mulf %162, %163 : vector<8x128xf32>
    %165 = vector.extract_strided_slice %164 {offsets = [0, 0], sizes = [8, 16], strides = [1, 1]} : vector<8x128xf32> to vector<8x16xf32>
    %c0_59 = arith.constant 0 : index
    %c0_60 = arith.constant 0 : index
    %166 = vector.load %arg5[%c0_59, %c0_60] : memref<8x16xf32, #tpu.memory_space<vmem>>, vector<8x16xf32>
    tpu.vector_store %arg5[%c0_59, %c0_60], %165 {strides = array<i32>} : memref<8x16xf32, #tpu.memory_space<vmem>>, vector<8x16xf32>,
    return
  }
  func.func @transform_0(%arg0: i32) -> (i32, i32) {
    %c0_i32 = arith.constant 0 : i32
    %c0_i32_0 = arith.constant 0 : i32
    return %arg0, %c0_i32 : i32, i32
  }
  func.func @transform_1(%arg0: i32) -> (i32, i32) {
    %c0_i32 = arith.constant 0 : i32
    %c0_i32_0 = arith.constant 0 : i32
    %c0_i32_1 = arith.constant 0 : i32
    return %c0_i32, %c0_i32_0 : i32, i32
  }
  func.func @transform_2(%arg0: i32) -> (i32, i32, i32) {
    %c0_i32 = arith.constant 0 : i32
    %c0_i32_0 = arith.constant 0 : i32
    %c0_i32_1 = arith.constant 0 : i32
    %c0_i32_2 = arith.constant 0 : i32
    return %c0_i32, %c0_i32_0, %c0_i32_1 : i32, i32, i32
  }
  func.func @transform_3(%arg0: i32) -> (i32, i32, i32) {
    %c0_i32 = arith.constant 0 : i32
    %c0_i32_0 = arith.constant 0 : i32
    %c0_i32_1 = arith.constant 0 : i32
    %c0_i32_2 = arith.constant 0 : i32
    return %c0_i32, %c0_i32_0, %c0_i32_1 : i32, i32, i32
  }
  func.func @transform_4(%arg0: i32) -> (i32, i32) {
    %c0_i32 = arith.constant 0 : i32
    %c0_i32_0 = arith.constant 0 : i32
    return %arg0, %c0_i32 : i32, i32
  }
}

</mosaic_0001>

<llo_original>
// kernel: tpu_custom_call.1
$region0: #{tpu_custom_call.1}
  #allocation0 [shape = 'u32[]', space=smem, size = 0x4, offset = 0x4, fixed_abs, tag = 'smem constant byte address 0x4 - core index']
  #allocation1 [shape = 'u32[72,128]{1,0:T(1,128)}', space=vmem, size = 0x9000, scoped, tag = 'internal scratch']
  %s0 = inlined_call_operand.hbm [shape: f32[8,16], index: 0, kind: input, shape index: {}]
  %s1 = inlined_call_operand.hbm [shape: bf16[16,256], index: 1, kind: input, shape index: {}]
  %s2 = inlined_call_operand.hbm [shape: bf16[3,128,256], index: 2, kind: input, shape index: {}]
  %s3 = inlined_call_operand.hbm [shape: f32[4,2,256], index: 3, kind: input, shape index: {}]
  %s4 = inlined_call_operand.hbm [shape: f32[8,16], index: 4, kind: output, shape index: {}]
  %s5 = sld [smem:[#allocation0]]
  $region42: #{tpu_custom_call.1} parent=0
    _
  %s7 = ssub.s32 1, %s5
  %s8 = scalar_select 0, %s7, %s5
  $region1: #{tpu_custom_call.1} parent=0
    #allocation2 [shape = 'u8[4096]{0}', space=vmem, size = 0x1000, scoped, tag = 'input window, operand 0, single buffered']
    #allocation3 [shape = 's32[1]{0}', space=sflag, size = 0x4, scoped, tag = 'scoped memory for tpu_custom_call.1']
    #allocation4 [shape = 's32[1]{0}', space=sflag, size = 0x4, scoped, tag = 'scoped memory for tpu_custom_call.1']
    #allocation5 [shape = 'u8[8192]{0}', space=vmem, size = 0x2000, scoped, tag = 'input window, operand 1, single buffered']
    #allocation6 [shape = 's32[1]{0}', space=sflag, size = 0x4, scoped, tag = 'scoped memory for tpu_custom_call.1']
    #allocation7 [shape = 'u8[196608]{0}', space=vmem, size = 0x30000, scoped, tag = 'input window, operand 2, single buffered']
    #allocation8 [shape = 'u8[8192]{0}', space=vmem, size = 0x2000, scoped, tag = 'input window, operand 3, single buffered']
    #allocation9 [shape = 's32[1]{0}', space=sflag, size = 0x4, scoped, tag = 'scoped memory for tpu_custom_call.1']
    #allocation10 [shape = 'u8[4096]{0}', space=vmem, size = 0x1000, scoped, tag = 'output window, operand 0, single buffered']
    %9 = vsyncpa [#allocation3], 0
    %10 = vsyncpa [#allocation6], 0
    %11 = vsyncpa [#allocation9], 0
    %12 = vsyncpa [#allocation4], 0
    // Predicated region
    $region2: #{tpu_custom_call.1} parent=1 // pred_check
      _
    $region3: #{tpu_custom_call.1} parent=1 // pred_check_branch
      %14 = sbr.rel (0) target = $region5
    $region4: #{tpu_custom_call.1} parent=1 // pred_region
      %16 = vsyncadd [#allocation3], 0
      %s18 = sshll.u32 %s0, 4
      %s19 = int_to_ptr.hbm [resolvable:$true] %s18
      %s20 = sshll.u32 [#allocation2], 4
      %s21 = int_to_ptr.vmem [resolvable:$true] %s20
      %23 = dma.hbm_to_vmem [thread:$0]  %s19, 128, %s21, [#allocation3]
    $region5: #{tpu_custom_call.1} parent=1 // pred_fallthru
      _
    // Predicated region
    $region6: #{tpu_custom_call.1} parent=1 // pred_check
      _
    $region7: #{tpu_custom_call.1} parent=1 // pred_check_branch
      %25 = sbr.rel (0) target = $region9
    $region8: #{tpu_custom_call.1} parent=1 // pred_region
      %27 = vsyncadd [#allocation6], 0
      %s28 = sshll.u32 %s1, 4
      %s29 = int_to_ptr.hbm [resolvable:$true] %s28
      %s30 = sshll.u32 [#allocation5], 4
      %s31 = int_to_ptr.vmem [resolvable:$true] %s30
      %36 = dma.hbm_to_vmem [thread:$0]  %s29, 256, %s31, [#allocation6], 128, 128, 8
    $region9: #{tpu_custom_call.1} parent=1 // pred_fallthru
      _
    // Predicated region
    $region10: #{tpu_custom_call.1} parent=1 // pred_check
      _
    $region11: #{tpu_custom_call.1} parent=1 // pred_check_branch
      %38 = sbr.rel (0) target = $region13
    $region12: #{tpu_custom_call.1} parent=1 // pred_region
      %40 = vsyncadd [#allocation6], 0
      %s41 = sshll.u32 %s2, 4
      %s42 = int_to_ptr.hbm [resolvable:$true] %s41
      %s43 = sshll.u32 [#allocation7], 4
      %s44 = int_to_ptr.vmem [resolvable:$true] %s43
      %49 = dma.hbm_to_vmem [thread:$0]  %s42, 6144, %s44, [#allocation6], 128, 128, 8
    $region13: #{tpu_custom_call.1} parent=1 // pred_fallthru
      _
    // Predicated region
    $region14: #{tpu_custom_call.1} parent=1 // pred_check
      _
    $region15: #{tpu_custom_call.1} parent=1 // pred_check_branch
      %51 = sbr.rel (0) target = $region17
    $region16: #{tpu_custom_call.1} parent=1 // pred_region
      %53 = vsyncadd [#allocation9], 0
      %s54 = sshll.u32 %s3, 4
      %s55 = int_to_ptr.hbm [resolvable:$true] %s54
      %s56 = sshll.u32 [#allocation8], 4
      %s57 = int_to_ptr.vmem [resolvable:$true] %s56
      %62 = dma.hbm_to_vmem [thread:$0]  %s55, 256, %s57, [#allocation9], 64, 64, 4
    $region17: #{tpu_custom_call.1} parent=1 // pred_fallthru
      _
    // Predicated region
    $region18: #{tpu_custom_call.1} parent=1 // pred_check
      _
    $region19: #{tpu_custom_call.1} parent=1 // pred_check_branch
      %64 = sbr.rel (0) target = $region21
    $region20: #{tpu_custom_call.1} parent=1 // pred_region
      %66 = dma.done [#allocation3], 128
    $region21: #{tpu_custom_call.1} parent=1 // pred_fallthru
      _
    // Predicated region
    $region22: #{tpu_custom_call.1} parent=1 // pred_check
      _
    $region23: #{tpu_custom_call.1} parent=1 // pred_check_branch
      %68 = sbr.rel (0) target = $region25
    $region24: #{tpu_custom_call.1} parent=1 // pred_region
      %70 = dma.done [#allocation6], 256
    $region25: #{tpu_custom_call.1} parent=1 // pred_fallthru
      _
    // Predicated region
    $region26: #{tpu_custom_call.1} parent=1 // pred_check
      _
    $region27: #{tpu_custom_call.1} parent=1 // pred_check_branch
      %72 = sbr.rel (0) target = $region29
    $region28: #{tpu_custom_call.1} parent=1 // pred_region
      %74 = dma.done [#allocation6], 6144
    $region29: #{tpu_custom_call.1} parent=1 // pred_fallthru
      _
    // Predicated region
    $region30: #{tpu_custom_call.1} parent=1 // pred_check
      _
    $region31: #{tpu_custom_call.1} parent=1 // pred_check_branch
      %76 = sbr.rel (0) target = $region33
    $region32: #{tpu_custom_call.1} parent=1 // pred_region
      %78 = dma.done [#allocation9], 256
    $region33: #{tpu_custom_call.1} parent=1 // pred_fallthru
      _
    %v80 = vld [vmem:[#allocation2] sm:$0xff]
    %v81 = vpack.c.bf16 %v80, %v80
    %v82 = vld [vmem:[#allocation5] sm:$0xff]
    %v83 = vld [vmem:[#allocation5 + $0x8] sm:$0xff]
    %v86 = vunpack.c.l.b16 %v82
    %v87 = vunpack.c.h.b16 %v82
    %v88 = vunpack.c.l.b16 %v83
    %v89 = vunpack.c.h.b16 %v83
    %v90 = vpack.c.b16 %v88, %v86
    %v91 = vpack.c.b16 %v89, %v87
    %vm94 = vcmask 130048
    %v96 = vsel %vm94, %v81, 0
    %98 = vmatpush.bf16.msra.mxu0 0
    %99 = vmatpush.bf16.msra.mxu0 0
    %100 = vmatpush.bf16.msra.mxu0 0
    %101 = vmatpush.bf16.msra.mxu0 0
    %102 = vmatpush.bf16.msra.mxu0 0
    %103 = vmatpush.bf16.msra.mxu0 0
    %104 = vmatpush.bf16.msra.mxu0 0
    %105 = vmatpush.bf16.msra.mxu0 %v90
    %106 = vmatmul.bf16.gmra.mxu0 %v96
    %v107 = vpop.f32.mrf.mxu0
    %v108 = vadd.f32 0.0, %v107
    %v109 = vpop.f32.mrf.mxu0
    %110 = vdwg.mxu0
    %111 = vmatpush.bf16.msra.mxu0 0
    %112 = vmatpush.bf16.msra.mxu0 0
    %113 = vmatpush.bf16.msra.mxu0 0
    %114 = vmatpush.bf16.msra.mxu0 0
    %115 = vmatpush.bf16.msra.mxu0 0
    %116 = vmatpush.bf16.msra.mxu0 0
    %117 = vmatpush.bf16.msra.mxu0 0
    %118 = vmatpush.bf16.msra.mxu0 %v91
    %119 = vmatmul.bf16.gmra.mxu0 %v96
    %v120 = vpop.f32.mrf.mxu0
    %v121 = vadd.f32 0.0, %v120
    %v122 = vpop.f32.mrf.mxu0
    %123 = vdwg.mxu0
    %v124 = vld [vmem:[#allocation8] sm:$0xf]
    %v125 = vrot.slane %v108, 4
    %v126 = vadd.f32 %v108, %v125
    %v127 = vrot.slane %v126, 2
    %v128 = vadd.f32 %v126, %v127
    %v129 = vrot.slane %v128, 1
    %v130 = vadd.f32 %v128, %v129
    %v131 = vrot.slane %v121, 4
    %v132 = vadd.f32 %v121, %v131
    %v133 = vrot.slane %v132, 2
    %v134 = vadd.f32 %v132, %v133
    %v135 = vrot.slane %v134, 1
    %v136 = vadd.f32 %v134, %v135
    %v137 = vrcp.pop 8.0
    %v138 = vmul.f32 8.0, %v137
    %v139 = vsub.f32 1.0, %v138
    %v140 = vmul.f32 %v137, %v139
    %v141 = vadd.f32 %v137, %v140
    %vm142 = vweird.f32 %v137
    %v143 = vsel %vm142, %v137, %v141
    %v144 = vmul.f32 %v130, %v143
    %v145 = vmul.f32 %v136, %v143
    %v146 = vmul.f32 %v108, %v108
    %v147 = vmul.f32 %v121, %v121
    %v148 = vrot.slane %v146, 4
    %v149 = vadd.f32 %v146, %v148
    %v150 = vrot.slane %v149, 2
    %v151 = vadd.f32 %v149, %v150
    %v152 = vrot.slane %v151, 1
    %v153 = vadd.f32 %v151, %v152
    %v154 = vrot.slane %v147, 4
    %v155 = vadd.f32 %v147, %v154
    %v156 = vrot.slane %v155, 2
    %v157 = vadd.f32 %v155, %v156
    %v158 = vrot.slane %v157, 1
    %v159 = vadd.f32 %v157, %v158
    %v160 = vmul.f32 %v153, %v143
    %v161 = vmul.f32 %v159, %v143
    %v162 = vmul.f32 %v144, %v144
    %v163 = vmul.f32 %v145, %v145
    %v164 = vsub.f32 %v160, %v162
    %v165 = vsub.f32 %v161, %v163
    %v166 = vadd.f32 %v164, 1e-05
    %v167 = vadd.f32 %v165, 1e-05
    %v168 = vrsqrt.pop %v166
    %v169 = vmul.f32 %v168, %v166
    %v170 = vmul.f32 %v169, %v168
    %v171 = vmul.f32 0.5, %v170
    %v172 = vsub.f32 1.5, %v171
    %v173 = vmul.f32 %v168, %v172
    %vm174 = vweird.f32 %v166
    %vm175 = vweird.f32 %v168
    %vm176 = vmor %vm174, %vm175
    %v177 = vsel %vm176, %v168, %v173
    %v178 = vrsqrt.pop %v167
    %v179 = vmul.f32 %v178, %v167
    %v180 = vmul.f32 %v179, %v178
    %v181 = vmul.f32 0.5, %v180
    %v182 = vsub.f32 1.5, %v181
    %v183 = vmul.f32 %v178, %v182
    %vm184 = vweird.f32 %v167
    %vm185 = vweird.f32 %v178
    %vm186 = vmor %vm184, %vm185
    %v187 = vsel %vm186, %v178, %v183
    %v190 = vrot.slane %v187, 6
    %vm191 = vcmask 1041408
    %v192 = vsel %vm191, %v177, %v190
    %v194 = vmul.f32 %v124, %v192
    %v196 = vperm.slane %v194, 0
    %v197 = vperm.slane %v194, 2
    %v200 = vmul.f32 %v144, %v196
    %v201 = vmul.f32 %v145, %v197
    %v204 = vrot.slane %v201, 6
    %v205 = vsel %vm191, %v200, %v204
    %v206 = vrot.slane %v205, 7
    %v208 = vsub.f32 %v124, %v206
    %v209 = vperm.slane %v196, 0
    %v210 = vperm.slane %v197, 0
    %v211 = vmul.f32 %v108, %v209
    %v212 = vmul.f32 %v121, %v210
    %v214 = vperm.slane %v208, 1
    %v215 = vperm.slane %v208, 3
    %v218 = vperm.slane %v214, 1
    %v219 = vperm.slane %v215, 1
    %v220 = vadd.f32 %v211, %v218
    %v221 = vadd.f32 %v212, %v219
    %v222 = vmul.f32 %v221, 0.5
    %v223 = vtanh.pop %v222
    %v224 = vmul.f32 %v223, 0.5
    %v225 = vadd.f32 %v224, 0.5
    %v226 = vmul.f32 %v220, %v225
    %v227 = vpack.c.bf16 %v226, %v226
    %v228 = vld [vmem:[#allocation7] sm:$0xff]
    %v229 = vld [vmem:[#allocation7 + $0x8] sm:$0xff]
    %v230 = vld [vmem:[#allocation7 + $0x10] sm:$0xff]
    %v231 = vld [vmem:[#allocation7 + $0x18] sm:$0xff]
    %v232 = vld [vmem:[#allocation7 + $0x20] sm:$0xff]
    %v233 = vld [vmem:[#allocation7 + $0x28] sm:$0xff]
    %v234 = vld [vmem:[#allocation7 + $0x30] sm:$0xff]
    %v235 = vld [vmem:[#allocation7 + $0x38] sm:$0xff]
    %v236 = vld [vmem:[#allocation7 + $0x40] sm:$0xff]
    %v237 = vld [vmem:[#allocation7 + $0x48] sm:$0xff]
    %v238 = vld [vmem:[#allocation7 + $0x50] sm:$0xff]
    %v239 = vld [vmem:[#allocation7 + $0x58] sm:$0xff]
    %v240 = vld [vmem:[#allocation7 + $0x60] sm:$0xff]
    %v241 = vld [vmem:[#allocation7 + $0x68] sm:$0xff]
    %v242 = vld [vmem:[#allocation7 + $0x70] sm:$0xff]
    %v243 = vld [vmem:[#allocation7 + $0x78] sm:$0xff]
    %v260 = vunpack.c.l.b16 %v228
    %v261 = vunpack.c.h.b16 %v228
    %v262 = vunpack.c.l.b16 %v229
    %v263 = vunpack.c.h.b16 %v229
    %v264 = vunpack.c.l.b16 %v230
    %v265 = vunpack.c.h.b16 %v230
    %v266 = vunpack.c.l.b16 %v231
    %v267 = vunpack.c.h.b16 %v231
    %v268 = vunpack.c.l.b16 %v232
    %v269 = vunpack.c.h.b16 %v232
    %v270 = vunpack.c.l.b16 %v233
    %v271 = vunpack.c.h.b16 %v233
    %v272 = vunpack.c.l.b16 %v234
    %v273 = vunpack.c.h.b16 %v234
    %v274 = vunpack.c.l.b16 %v235
    %v275 = vunpack.c.h.b16 %v235
    %v276 = vunpack.c.l.b16 %v236
    %v277 = vunpack.c.h.b16 %v236
    %v278 = vunpack.c.l.b16 %v237
    %v279 = vunpack.c.h.b16 %v237
    %v280 = vunpack.c.l.b16 %v238
    %v281 = vunpack.c.h.b16 %v238
    %v282 = vunpack.c.l.b16 %v239
    %v283 = vunpack.c.h.b16 %v239
    %v284 = vunpack.c.l.b16 %v240
    %v285 = vunpack.c.h.b16 %v240
    %v286 = vunpack.c.l.b16 %v241
    %v287 = vunpack.c.h.b16 %v241
    %v288 = vunpack.c.l.b16 %v242
    %v289 = vunpack.c.h.b16 %v242
    %v290 = vunpack.c.l.b16 %v243
    %v291 = vunpack.c.h.b16 %v243
    %v292 = vpack.c.b16 %v262, %v260
    %v293 = vpack.c.b16 %v263, %v261
    %v294 = vpack.c.b16 %v266, %v264
    %v295 = vpack.c.b16 %v267, %v265
    %v296 = vpack.c.b16 %v270, %v268
    %v297 = vpack.c.b16 %v271, %v269
    %v298 = vpack.c.b16 %v274, %v272
    %v299 = vpack.c.b16 %v275, %v273
    %v300 = vpack.c.b16 %v278, %v276
    %v301 = vpack.c.b16 %v279, %v277
    %v302 = vpack.c.b16 %v282, %v280
    %v303 = vpack.c.b16 %v283, %v281
    %v304 = vpack.c.b16 %v286, %v284
    %v305 = vpack.c.b16 %v287, %v285
    %v306 = vpack.c.b16 %v290, %v288
    %v307 = vpack.c.b16 %v291, %v289
    %324 = vmatpush.bf16.msra.mxu0 %v306
    %325 = vmatpush.bf16.msra.mxu0 %v304
    %326 = vmatpush.bf16.msra.mxu0 %v302
    %327 = vmatpush.bf16.msra.mxu0 %v300
    %328 = vmatpush.bf16.msra.mxu0 %v298
    %329 = vmatpush.bf16.msra.mxu0 %v296
    %330 = vmatpush.bf16.msra.mxu0 %v294
    %331 = vmatpush.bf16.msra.mxu0 %v292
    %332 = vmatmul.bf16.gmra.mxu0 %v227
    %v333 = vpop.f32.mrf.mxu0
    %v334 = vadd.f32 0.0, %v333
    %v335 = vpop.f32.mrf.mxu0
    %336 = vdwg.mxu0
    %337 = vmatpush.bf16.msra.mxu0 %v307
    %338 = vmatpush.bf16.msra.mxu0 %v305
    %339 = vmatpush.bf16.msra.mxu0 %v303
    %340 = vmatpush.bf16.msra.mxu0 %v301
    %341 = vmatpush.bf16.msra.mxu0 %v299
    %342 = vmatpush.bf16.msra.mxu0 %v297
    %343 = vmatpush.bf16.msra.mxu0 %v295
    %344 = vmatpush.bf16.msra.mxu0 %v293
    %345 = vmatmul.bf16.gmra.mxu0 %v227
    %v346 = vpop.f32.mrf.mxu0
    %v347 = vadd.f32 0.0, %v346
    %v348 = vpop.f32.mrf.mxu0
    %349 = vdwg.mxu0
    %s350 = scalar_lea.vmem [#allocation8], 4
    %v351 = vld [vmem:[%s350] sm:$0xf]
    %v352 = vrot.slane %v334, 4
    %v353 = vadd.f32 %v334, %v352
    %v354 = vrot.slane %v353, 2
    %v355 = vadd.f32 %v353, %v354
    %v356 = vrot.slane %v355, 1
    %v357 = vadd.f32 %v355, %v356
    %v358 = vrot.slane %v347, 4
    %v359 = vadd.f32 %v347, %v358
    %v360 = vrot.slane %v359, 2
    %v361 = vadd.f32 %v359, %v360
    %v362 = vrot.slane %v361, 1
    %v363 = vadd.f32 %v361, %v362
    %v364 = vmul.f32 %v357, %v143
    %v365 = vmul.f32 %v363, %v143
    %v366 = vmul.f32 %v334, %v334
    %v367 = vmul.f32 %v347, %v347
    %v368 = vrot.slane %v366, 4
    %v369 = vadd.f32 %v366, %v368
    %v370 = vrot.slane %v369, 2
    %v371 = vadd.f32 %v369, %v370
    %v372 = vrot.slane %v371, 1
    %v373 = vadd.f32 %v371, %v372
    %v374 = vrot.slane %v367, 4
    %v375 = vadd.f32 %v367, %v374
    %v376 = vrot.slane %v375, 2
    %v377 = vadd.f32 %v375, %v376
    %v378 = vrot.slane %v377, 1
    %v379 = vadd.f32 %v377, %v378
    %v380 = vmul.f32 %v373, %v143
    %v381 = vmul.f32 %v379, %v143
    %v382 = vmul.f32 %v364, %v364
    %v383 = vmul.f32 %v365, %v365
    %v384 = vsub.f32 %v380, %v382
    %v385 = vsub.f32 %v381, %v383
    %v386 = vadd.f32 %v384, 1e-05
    %v387 = vadd.f32 %v385, 1e-05
    %v388 = vrsqrt.pop %v386
    %v389 = vmul.f32 %v388, %v386
    %v390 = vmul.f32 %v389, %v388
    %v391 = vmul.f32 0.5, %v390
    %v392 = vsub.f32 1.5, %v391
    %v393 = vmul.f32 %v388, %v392
    %vm394 = vweird.f32 %v386
    %vm395 = vweird.f32 %v388
    %vm396 = vmor %vm394, %vm395
    %v397 = vsel %vm396, %v388, %v393
    %v398 = vrsqrt.pop %v387
    %v399 = vmul.f32 %v398, %v387
    %v400 = vmul.f32 %v399, %v398
    %v401 = vmul.f32 0.5, %v400
    %v402 = vsub.f32 1.5, %v401
    %v403 = vmul.f32 %v398, %v402
    %vm404 = vweird.f32 %v387
    %vm405 = vweird.f32 %v398
    %vm406 = vmor %vm404, %vm405
    %v407 = vsel %vm406, %v398, %v403
    %v410 = vrot.slane %v407, 6
    %v411 = vsel %vm191, %v397, %v410
    %v413 = vmul.f32 %v351, %v411
    %v415 = vperm.slane %v413, 0
    %v416 = vperm.slane %v413, 2
    %v419 = vmul.f32 %v364, %v415
    %v420 = vmul.f32 %v365, %v416
    %v423 = vrot.slane %v420, 6
    %v424 = vsel %vm191, %v419, %v423
    %v425 = vrot.slane %v424, 7
    %v427 = vsub.f32 %v351, %v425
    %v428 = vperm.slane %v415, 0
    %v429 = vperm.slane %v416, 0
    %v430 = vmul.f32 %v334, %v428
    %v431 = vmul.f32 %v347, %v429
    %v433 = vperm.slane %v427, 1
    %v434 = vperm.slane %v427, 3
    %v437 = vperm.slane %v433, 1
    %v438 = vperm.slane %v434, 1
    %v439 = vadd.f32 %v430, %v437
    %v440 = vadd.f32 %v431, %v438
    %v441 = vmul.f32 %v440, 0.5
    %v442 = vtanh.pop %v441
    %v443 = vmul.f32 %v442, 0.5
    %v444 = vadd.f32 %v443, 0.5
    %v445 = vmul.f32 %v439, %v444
    %v446 = vadd.f32 %v226, %v445
    %v447 = vmul.f32 %v446, 0.70710677
    %v448 = vpack.c.bf16 %v447, %v447
    %s449 = scalar_lea.vmem [#allocation7], 128
    %v450 = vld [vmem:[%s449] sm:$0xff]
    %v451 = vld [vmem:[%s449 + $0x8] sm:$0xff]
    %v452 = vld [vmem:[%s449 + $0x10] sm:$0xff]
    %v453 = vld [vmem:[%s449 + $0x18] sm:$0xff]
    %v454 = vld [vmem:[%s449 + $0x20] sm:$0xff]
    %v455 = vld [vmem:[%s449 + $0x28] sm:$0xff]
    %v456 = vld [vmem:[%s449 + $0x30] sm:$0xff]
    %v457 = vld [vmem:[%s449 + $0x38] sm:$0xff]
    %v458 = vld [vmem:[%s449 + $0x40] sm:$0xff]
    %v459 = vld [vmem:[%s449 + $0x48] sm:$0xff]
    %v460 = vld [vmem:[%s449 + $0x50] sm:$0xff]
    %v461 = vld [vmem:[%s449 + $0x58] sm:$0xff]
    %v462 = vld [vmem:[%s449 + $0x60] sm:$0xff]
    %v463 = vld [vmem:[%s449 + $0x68] sm:$0xff]
    %v464 = vld [vmem:[%s449 + $0x70] sm:$0xff]
    %v465 = vld [vmem:[%s449 + $0x78] sm:$0xff]
    %v482 = vunpack.c.l.b16 %v450
    %v483 = vunpack.c.h.b16 %v450
    %v484 = vunpack.c.l.b16 %v451
    %v485 = vunpack.c.h.b16 %v451
    %v486 = vunpack.c.l.b16 %v452
    %v487 = vunpack.c.h.b16 %v452
    %v488 = vunpack.c.l.b16 %v453
    %v489 = vunpack.c.h.b16 %v453
    %v490 = vunpack.c.l.b16 %v454
    %v491 = vunpack.c.h.b16 %v454
    %v492 = vunpack.c.l.b16 %v455
    %v493 = vunpack.c.h.b16 %v455
    %v494 = vunpack.c.l.b16 %v456
    %v495 = vunpack.c.h.b16 %v456
    %v496 = vunpack.c.l.b16 %v457
    %v497 = vunpack.c.h.b16 %v457
    %v498 = vunpack.c.l.b16 %v458
    %v499 = vunpack.c.h.b16 %v458
    %v500 = vunpack.c.l.b16 %v459
    %v501 = vunpack.c.h.b16 %v459
    %v502 = vunpack.c.l.b16 %v460
    %v503 = vunpack.c.h.b16 %v460
    %v504 = vunpack.c.l.b16 %v461
    %v505 = vunpack.c.h.b16 %v461
    %v506 = vunpack.c.l.b16 %v462
    %v507 = vunpack.c.h.b16 %v462
    %v508 = vunpack.c.l.b16 %v463
    %v509 = vunpack.c.h.b16 %v463
    %v510 = vunpack.c.l.b16 %v464
    %v511 = vunpack.c.h.b16 %v464
    %v512 = vunpack.c.l.b16 %v465
    %v513 = vunpack.c.h.b16 %v465
    %v514 = vpack.c.b16 %v484, %v482
    %v515 = vpack.c.b16 %v485, %v483
    %v516 = vpack.c.b16 %v488, %v486
    %v517 = vpack.c.b16 %v489, %v487
    %v518 = vpack.c.b16 %v492, %v490
    %v519 = vpack.c.b16 %v493, %v491
    %v520 = vpack.c.b16 %v496, %v494
    %v521 = vpack.c.b16 %v497, %v495
    %v522 = vpack.c.b16 %v500, %v498
    %v523 = vpack.c.b16 %v501, %v499
    %v524 = vpack.c.b16 %v504, %v502
    %v525 = vpack.c.b16 %v505, %v503
    %v526 = vpack.c.b16 %v508, %v506
    %v527 = vpack.c.b16 %v509, %v507
    %v528 = vpack.c.b16 %v512, %v510
    %v529 = vpack.c.b16 %v513, %v511
    %546 = vmatpush.bf16.msra.mxu0 %v528
    %547 = vmatpush.bf16.msra.mxu0 %v526
    %548 = vmatpush.bf16.msra.mxu0 %v524
    %549 = vmatpush.bf16.msra.mxu0 %v522
    %550 = vmatpush.bf16.msra.mxu0 %v520
    %551 = vmatpush.bf16.msra.mxu0 %v518
    %552 = vmatpush.bf16.msra.mxu0 %v516
    %553 = vmatpush.bf16.msra.mxu0 %v514
    %554 = vmatmul.bf16.gmra.mxu0 %v448
    %v555 = vpop.f32.mrf.mxu0
    %v556 = vadd.f32 0.0, %v555
    %v557 = vpop.f32.mrf.mxu0
    %558 = vdwg.mxu0
    %559 = vmatpush.bf16.msra.mxu0 %v529
    %560 = vmatpush.bf16.msra.mxu0 %v527
    %561 = vmatpush.bf16.msra.mxu0 %v525
    %562 = vmatpush.bf16.msra.mxu0 %v523
    %563 = vmatpush.bf16.msra.mxu0 %v521
    %564 = vmatpush.bf16.msra.mxu0 %v519
    %565 = vmatpush.bf16.msra.mxu0 %v517
    %566 = vmatpush.bf16.msra.mxu0 %v515
    %567 = vmatmul.bf16.gmra.mxu0 %v448
    %v568 = vpop.f32.mrf.mxu0
    %v569 = vadd.f32 0.0, %v568
    %v570 = vpop.f32.mrf.mxu0
    %571 = vdwg.mxu0
    %s572 = scalar_lea.vmem [#allocation8], 8
    %v573 = vld [vmem:[%s572] sm:$0xf]
    %v574 = vrot.slane %v556, 4
    %v575 = vadd.f32 %v556, %v574
    %v576 = vrot.slane %v575, 2
    %v577 = vadd.f32 %v575, %v576
    %v578 = vrot.slane %v577, 1
    %v579 = vadd.f32 %v577, %v578
    %v580 = vrot.slane %v569, 4
    %v581 = vadd.f32 %v569, %v580
    %v582 = vrot.slane %v581, 2
    %v583 = vadd.f32 %v581, %v582
    %v584 = vrot.slane %v583, 1
    %v585 = vadd.f32 %v583, %v584
    %v586 = vmul.f32 %v579, %v143
    %v587 = vmul.f32 %v585, %v143
    %v588 = vmul.f32 %v556, %v556
    %v589 = vmul.f32 %v569, %v569
    %v590 = vrot.slane %v588, 4
    %v591 = vadd.f32 %v588, %v590
    %v592 = vrot.slane %v591, 2
    %v593 = vadd.f32 %v591, %v592
    %v594 = vrot.slane %v593, 1
    %v595 = vadd.f32 %v593, %v594
    %v596 = vrot.slane %v589, 4
    %v597 = vadd.f32 %v589, %v596
    %v598 = vrot.slane %v597, 2
    %v599 = vadd.f32 %v597, %v598
    %v600 = vrot.slane %v599, 1
    %v601 = vadd.f32 %v599, %v600
    %v602 = vmul.f32 %v595, %v143
    %v603 = vmul.f32 %v601, %v143
    %v604 = vmul.f32 %v586, %v586
    %v605 = vmul.f32 %v587, %v587
    %v606 = vsub.f32 %v602, %v604
    %v607 = vsub.f32 %v603, %v605
    %v608 = vadd.f32 %v606, 1e-05
    %v609 = vadd.f32 %v607, 1e-05
    %v610 = vrsqrt.pop %v608
    %v611 = vmul.f32 %v610, %v608
    %v612 = vmul.f32 %v611, %v610
    %v613 = vmul.f32 0.5, %v612
    %v614 = vsub.f32 1.5, %v613
    %v615 = vmul.f32 %v610, %v614
    %vm616 = vweird.f32 %v608
    %vm617 = vweird.f32 %v610
    %vm618 = vmor %vm616, %vm617
    %v619 = vsel %vm618, %v610, %v615
    %v620 = vrsqrt.pop %v609
    %v621 = vmul.f32 %v620, %v609
    %v622 = vmul.f32 %v621, %v620
    %v623 = vmul.f32 0.5, %v622
    %v624 = vsub.f32 1.5, %v623
    %v625 = vmul.f32 %v620, %v624
    %vm626 = vweird.f32 %v609
    %vm627 = vweird.f32 %v620
    %vm628 = vmor %vm626, %vm627
    %v629 = vsel %vm628, %v620, %v625
    %v632 = vrot.slane %v629, 6
    %v633 = vsel %vm191, %v619, %v632
    %v635 = vmul.f32 %v573, %v633
    %v637 = vperm.slane %v635, 0
    %v638 = vperm.slane %v635, 2
    %v641 = vmul.f32 %v586, %v637
    %v642 = vmul.f32 %v587, %v638
    %v645 = vrot.slane %v642, 6
    %v646 = vsel %vm191, %v641, %v645
    %v647 = vrot.slane %v646, 7
    %v649 = vsub.f32 %v573, %v647
    %v650 = vperm.slane %v637, 0
    %v651 = vperm.slane %v638, 0
    %v652 = vmul.f32 %v556, %v650
    %v653 = vmul.f32 %v569, %v651
    %v655 = vperm.slane %v649, 1
    %v656 = vperm.slane %v649, 3
    %v659 = vperm.slane %v655, 1
    %v660 = vperm.slane %v656, 1
    %v661 = vadd.f32 %v652, %v659
    %v662 = vadd.f32 %v653, %v660
    %v663 = vmul.f32 %v662, 0.5
    %v664 = vtanh.pop %v663
    %v665 = vmul.f32 %v664, 0.5
    %v666 = vadd.f32 %v665, 0.5
    %v667 = vmul.f32 %v661, %v666
    %v668 = vadd.f32 %v447, %v667
    %v669 = vmul.f32 %v668, 0.70710677
    %v670 = vpack.c.bf16 %v669, %v669
    %s671 = scalar_lea.vmem [#allocation7], 256
    %v672 = vld [vmem:[%s671] sm:$0xff]
    %v673 = vld [vmem:[%s671 + $0x8] sm:$0xff]
    %v674 = vld [vmem:[%s671 + $0x10] sm:$0xff]
    %v675 = vld [vmem:[%s671 + $0x18] sm:$0xff]
    %v676 = vld [vmem:[%s671 + $0x20] sm:$0xff]
    %v677 = vld [vmem:[%s671 + $0x28] sm:$0xff]
    %v678 = vld [vmem:[%s671 + $0x30] sm:$0xff]
    %v679 = vld [vmem:[%s671 + $0x38] sm:$0xff]
    %v680 = vld [vmem:[%s671 + $0x40] sm:$0xff]
    %v681 = vld [vmem:[%s671 + $0x48] sm:$0xff]
    %v682 = vld [vmem:[%s671 + $0x50] sm:$0xff]
    %v683 = vld [vmem:[%s671 + $0x58] sm:$0xff]
    %v684 = vld [vmem:[%s671 + $0x60] sm:$0xff]
    %v685 = vld [vmem:[%s671 + $0x68] sm:$0xff]
    %v686 = vld [vmem:[%s671 + $0x70] sm:$0xff]
    %v687 = vld [vmem:[%s671 + $0x78] sm:$0xff]
    %v704 = vunpack.c.l.b16 %v672
    %v705 = vunpack.c.h.b16 %v672
    %v706 = vunpack.c.l.b16 %v673
    %v707 = vunpack.c.h.b16 %v673
    %v708 = vunpack.c.l.b16 %v674
    %v709 = vunpack.c.h.b16 %v674
    %v710 = vunpack.c.l.b16 %v675
    %v711 = vunpack.c.h.b16 %v675
    %v712 = vunpack.c.l.b16 %v676
    %v713 = vunpack.c.h.b16 %v676
    %v714 = vunpack.c.l.b16 %v677
    %v715 = vunpack.c.h.b16 %v677
    %v716 = vunpack.c.l.b16 %v678
    %v717 = vunpack.c.h.b16 %v678
    %v718 = vunpack.c.l.b16 %v679
    %v719 = vunpack.c.h.b16 %v679
    %v720 = vunpack.c.l.b16 %v680
    %v721 = vunpack.c.h.b16 %v680
    %v722 = vunpack.c.l.b16 %v681
    %v723 = vunpack.c.h.b16 %v681
    %v724 = vunpack.c.l.b16 %v682
    %v725 = vunpack.c.h.b16 %v682
    %v726 = vunpack.c.l.b16 %v683
    %v727 = vunpack.c.h.b16 %v683
    %v728 = vunpack.c.l.b16 %v684
    %v729 = vunpack.c.h.b16 %v684
    %v730 = vunpack.c.l.b16 %v685
    %v731 = vunpack.c.h.b16 %v685
    %v732 = vunpack.c.l.b16 %v686
    %v733 = vunpack.c.h.b16 %v686
    %v734 = vunpack.c.l.b16 %v687
    %v735 = vunpack.c.h.b16 %v687
    %v736 = vpack.c.b16 %v706, %v704
    %v737 = vpack.c.b16 %v707, %v705
    %v738 = vpack.c.b16 %v710, %v708
    %v739 = vpack.c.b16 %v711, %v709
    %v740 = vpack.c.b16 %v714, %v712
    %v741 = vpack.c.b16 %v715, %v713
    %v742 = vpack.c.b16 %v718, %v716
    %v743 = vpack.c.b16 %v719, %v717
    %v744 = vpack.c.b16 %v722, %v720
    %v745 = vpack.c.b16 %v723, %v721
    %v746 = vpack.c.b16 %v726, %v724
    %v747 = vpack.c.b16 %v727, %v725
    %v748 = vpack.c.b16 %v730, %v728
    %v749 = vpack.c.b16 %v731, %v729
    %v750 = vpack.c.b16 %v734, %v732
    %v751 = vpack.c.b16 %v735, %v733
    %768 = vmatpush.bf16.msra.mxu0 %v750
    %769 = vmatpush.bf16.msra.mxu0 %v748
    %770 = vmatpush.bf16.msra.mxu0 %v746
    %771 = vmatpush.bf16.msra.mxu0 %v744
    %772 = vmatpush.bf16.msra.mxu0 %v742
    %773 = vmatpush.bf16.msra.mxu0 %v740
    %774 = vmatpush.bf16.msra.mxu0 %v738
    %775 = vmatpush.bf16.msra.mxu0 %v736
    %776 = vmatmul.bf16.gmra.mxu0 %v670
    %v777 = vpop.f32.mrf.mxu0
    %v778 = vadd.f32 0.0, %v777
    %v779 = vpop.f32.mrf.mxu0
    %780 = vdwg.mxu0
    %781 = vmatpush.bf16.msra.mxu0 %v751
    %782 = vmatpush.bf16.msra.mxu0 %v749
    %783 = vmatpush.bf16.msra.mxu0 %v747
    %784 = vmatpush.bf16.msra.mxu0 %v745
    %785 = vmatpush.bf16.msra.mxu0 %v743
    %786 = vmatpush.bf16.msra.mxu0 %v741
    %787 = vmatpush.bf16.msra.mxu0 %v739
    %788 = vmatpush.bf16.msra.mxu0 %v737
    %789 = vmatmul.bf16.gmra.mxu0 %v670
    %v790 = vpop.f32.mrf.mxu0
    %v791 = vadd.f32 0.0, %v790
    %v792 = vpop.f32.mrf.mxu0
    %793 = vdwg.mxu0
    %s794 = scalar_lea.vmem [#allocation8], 12
    %v795 = vld [vmem:[%s794] sm:$0xf]
    %v796 = vrot.slane %v778, 4
    %v797 = vadd.f32 %v778, %v796
    %v798 = vrot.slane %v797, 2
    %v799 = vadd.f32 %v797, %v798
    %v800 = vrot.slane %v799, 1
    %v801 = vadd.f32 %v799, %v800
    %v802 = vrot.slane %v791, 4
    %v803 = vadd.f32 %v791, %v802
    %v804 = vrot.slane %v803, 2
    %v805 = vadd.f32 %v803, %v804
    %v806 = vrot.slane %v805, 1
    %v807 = vadd.f32 %v805, %v806
    %v808 = vmul.f32 %v801, %v143
    %v809 = vmul.f32 %v807, %v143
    %v810 = vmul.f32 %v778, %v778
    %v811 = vmul.f32 %v791, %v791
    %v812 = vrot.slane %v810, 4
    %v813 = vadd.f32 %v810, %v812
    %v814 = vrot.slane %v813, 2
    %v815 = vadd.f32 %v813, %v814
    %v816 = vrot.slane %v815, 1
    %v817 = vadd.f32 %v815, %v816
    %v818 = vrot.slane %v811, 4
    %v819 = vadd.f32 %v811, %v818
    %v820 = vrot.slane %v819, 2
    %v821 = vadd.f32 %v819, %v820
    %v822 = vrot.slane %v821, 1
    %v823 = vadd.f32 %v821, %v822
    %v824 = vmul.f32 %v817, %v143
    %v825 = vmul.f32 %v823, %v143
    %v826 = vmul.f32 %v808, %v808
    %v827 = vmul.f32 %v809, %v809
    %v828 = vsub.f32 %v824, %v826
    %v829 = vsub.f32 %v825, %v827
    %v830 = vadd.f32 %v828, 1e-05
    %v831 = vadd.f32 %v829, 1e-05
    %v832 = vrsqrt.pop %v830
    %v833 = vmul.f32 %v832, %v830
    %v834 = vmul.f32 %v833, %v832
    %v835 = vmul.f32 0.5, %v834
    %v836 = vsub.f32 1.5, %v835
    %v837 = vmul.f32 %v832, %v836
    %vm838 = vweird.f32 %v830
    %vm839 = vweird.f32 %v832
    %vm840 = vmor %vm838, %vm839
    %v841 = vsel %vm840, %v832, %v837
    %v842 = vrsqrt.pop %v831
    %v843 = vmul.f32 %v842, %v831
    %v844 = vmul.f32 %v843, %v842
    %v845 = vmul.f32 0.5, %v844
    %v846 = vsub.f32 1.5, %v845
    %v847 = vmul.f32 %v842, %v846
    %vm848 = vweird.f32 %v831
    %vm849 = vweird.f32 %v842
    %vm850 = vmor %vm848, %vm849
    %v851 = vsel %vm850, %v842, %v847
    %v854 = vrot.slane %v851, 6
    %v855 = vsel %vm191, %v841, %v854
    %v857 = vmul.f32 %v795, %v855
    %v859 = vperm.slane %v857, 0
    %v860 = vperm.slane %v857, 2
    %v863 = vmul.f32 %v808, %v859
    %v864 = vmul.f32 %v809, %v860
    %v867 = vrot.slane %v864, 6
    %v868 = vsel %vm191, %v863, %v867
    %v869 = vrot.slane %v868, 7
    %v871 = vsub.f32 %v795, %v869
    %v872 = vperm.slane %v859, 0
    %v873 = vperm.slane %v860, 0
    %v874 = vmul.f32 %v778, %v872
    %v875 = vmul.f32 %v791, %v873
    %v877 = vperm.slane %v871, 1
    %v878 = vperm.slane %v871, 3
    %v881 = vperm.slane %v877, 1
    %v882 = vperm.slane %v878, 1
    %v883 = vadd.f32 %v874, %v881
    %v884 = vadd.f32 %v875, %v882
    %v885 = vmul.f32 %v884, 0.5
    %v886 = vtanh.pop %v885
    %v887 = vmul.f32 %v886, 0.5
    %v888 = vadd.f32 %v887, 0.5
    %v889 = vmul.f32 %v883, %v888
    %v890 = vadd.f32 %v669, %v889
    %v891 = vmul.f32 %v890, 0.70710677
    %892 = vst.msk [vmem:[#allocation10] sm:$0xff] %vm94, %v891
    // Predicated region
    $region34: #{tpu_custom_call.1} parent=1 // pred_check
      _
    $region35: #{tpu_custom_call.1} parent=1 // pred_check_branch
      %894 = sbr.rel (0) target = $region37
    $region36: #{tpu_custom_call.1} parent=1 // pred_region
      %896 = vsyncadd [#allocation4], 0
      %s898 = sshll.u32 [#allocation10], 4
      %s899 = int_to_ptr.vmem [resolvable:$true] %s898
      %s900 = sshll.u32 %s4, 4
      %s901 = int_to_ptr.hbm [resolvable:$true] %s900
      %903 = dma.vmem_to_hbm [thread:$0]  %s899, 128, %s901, [#allocation4]
    $region37: #{tpu_custom_call.1} parent=1 // pred_fallthru
      _
    // Predicated region
    $region38: #{tpu_custom_call.1} parent=1 // pred_check
      _
    $region39: #{tpu_custom_call.1} parent=1 // pred_check_branch
      %905 = sbr.rel (0) target = $region41
    $region40: #{tpu_custom_call.1} parent=1 // pred_region
      %907 = dma.done [#allocation4], 128
    $region41: #{tpu_custom_call.1} parent=1 // pred_fallthru
      _
    %908 = vsyncpa [#allocation3], 1
    %909 = vsyncpa [#allocation6], 1
    %910 = vsyncpa [#allocation9], 1
    %911 = vsyncpa [#allocation4], 1

// kernel: tpu_custom_call.1
$region0: #{tpu_custom_call.1}
  #allocation0 [shape = 'u32[]', space=smem, size = 0x4, offset = 0x4, fixed_abs, tag = 'smem constant byte address 0x4 - core index']
  #allocation1 [shape = 'u32[72,128]{1,0:T(1,128)}', space=vmem, size = 0x9000, scoped, tag = 'internal scratch']
  %s0 = inlined_call_operand.hbm [shape: f32[8,16], index: 0, kind: input, shape index: {}]
  %s1 = inlined_call_operand.hbm [shape: bf16[16,256], index: 1, kind: input, shape index: {}]
  %s2 = inlined_call_operand.hbm [shape: bf16[3,128,256], index: 2, kind: input, shape index: {}]
  %s3 = inlined_call_operand.hbm [shape: f32[4,2,256], index: 3, kind: input, shape index: {}]
  %s4 = inlined_call_operand.hbm [shape: f32[8,16], index: 4, kind: output, shape index: {}]
  %s5 = sld [smem:[#allocation0]]
  $region42: #{tpu_custom_call.1} parent=0
    _
  %s7 = ssub.s32 1, %s5
  %s8 = scalar_select 0, %s7, %s5
  $region1: #{tpu_custom_call.1} parent=0
    #allocation2 [shape = 'u8[4096]{0}', space=vmem, size = 0x1000, scoped, tag = 'input window, operand 0, single buffered']
    #allocation3 [shape = 's32[1]{0}', space=sflag, size = 0x4, scoped, tag = 'scoped memory for tpu_custom_call.1']
    #allocation4 [shape = 's32[1]{0}', space=sflag, size = 0x4, scoped, tag = 'scoped memory for tpu_custom_call.1']
    #allocation5 [shape = 'u8[8192]{0}', space=vmem, size = 0x2000, scoped, tag = 'input window, operand 1, single buffered']
    #allocation6 [shape = 's32[1]{0}', space=sflag, size = 0x4, scoped, tag = 'scoped memory for tpu_custom_call.1']
    #allocation7 [shape = 'u8[196608]{0}', space=vmem, size = 0x30000, scoped, tag = 'input window, operand 2, single buffered']
    #allocation8 [shape = 'u8[8192]{0}', space=vmem, size = 0x2000, scoped, tag = 'input window, operand 3, single buffered']
    #allocation9 [shape = 's32[1]{0}', space=sflag, size = 0x4, scoped, tag = 'scoped memory for tpu_custom_call.1']
    #allocation10 [shape = 'u8[4096]{0}', space=vmem, size = 0x1000, scoped, tag = 'output window, operand 0, single buffered']
    %9 = vsyncpa [#allocation3], 0
    %10 = vsyncpa [#allocation6], 0
    %11 = vsyncpa [#allocation9], 0
    %12 = vsyncpa [#allocation4], 0
    // Predicated region
    $region2: #{tpu_custom_call.1} parent=1 // pred_check
      _
    $region3: #{tpu_custom_call.1} parent=1 // pred_check_branch
      %14 = sbr.rel (0) target = $region5
    $region4: #{tpu_custom_call.1} parent=1 // pred_region
      %16 = vsyncadd [#allocation3], 0
      %s18 = sshll.u32 %s0, 4
      %s19 = int_to_ptr.hbm [resolvable:$true] %s18
      %s20 = sshll.u32 [#allocation2], 4
      %s21 = int_to_ptr.vmem [resolvable:$true] %s20
      %23 = dma.hbm_to_vmem [thread:$0]  %s19, 128, %s21, [#allocation3]
    $region5: #{tpu_custom_call.1} parent=1 // pred_fallthru
      _
    // Predicated region
    $region6: #{tpu_custom_call.1} parent=1 // pred_check
      _
    $region7: #{tpu_custom_call.1} parent=1 // pred_check_branch
      %25 = sbr.rel (0) target = $region9
    $region8: #{tpu_custom_call.1} parent=1 // pred_region
      %27 = vsyncadd [#allocation6], 0
      %s28 = sshll.u32 %s1, 4
      %s29 = int_to_ptr.hbm [resolvable:$true] %s28
      %s30 = sshll.u32 [#allocation5], 4
      %s31 = int_to_ptr.vmem [resolvable:$true] %s30
      %36 = dma.hbm_to_vmem [thread:$0]  %s29, 256, %s31, [#allocation6], 128, 128, 8
    $region9: #{tpu_custom_call.1} parent=1 // pred_fallthru
      _
    // Predicated region
    $region10: #{tpu_custom_call.1} parent=1 // pred_check
      _
    $region11: #{tpu_custom_call.1} parent=1 // pred_check_branch
      %38 = sbr.rel (0) target = $region13
    $region12: #{tpu_custom_call.1} parent=1 // pred_region
      %40 = vsyncadd [#allocation6], 0
      %s41 = sshll.u32 %s2, 4
      %s42 = int_to_ptr.hbm [resolvable:$true] %s41
      %s43 = sshll.u32 [#allocation7], 4
      %s44 = int_to_ptr.vmem [resolvable:$true] %s43
      %49 = dma.hbm_to_vmem [thread:$0]  %s42, 6144, %s44, [#allocation6], 128, 128, 8
    $region13: #{tpu_custom_call.1} parent=1 // pred_fallthru
      _
    // Predicated region
    $region14: #{tpu_custom_call.1} parent=1 // pred_check
      _
    $region15: #{tpu_custom_call.1} parent=1 // pred_check_branch
      %51 = sbr.rel (0) target = $region17
    $region16: #{tpu_custom_call.1} parent=1 // pred_region
      %53 = vsyncadd [#allocation9], 0
      %s54 = sshll.u32 %s3, 4
      %s55 = int_to_ptr.hbm [resolvable:$true] %s54
      %s56 = sshll.u32 [#allocation8], 4
      %s57 = int_to_ptr.vmem [resolvable:$true] %s56
      %62 = dma.hbm_to_vmem [thread:$0]  %s55, 256, %s57, [#allocation9], 64, 64, 4
    $region17: #{tpu_custom_call.1} parent=1 // pred_fallthru
      _
    // Predicated region
    $region18: #{tpu_custom_call.1} parent=1 // pred_check
      _
    $region19: #{tpu_custom_call.1} parent=1 // pred_check_branch
      %64 = sbr.rel (0) target = $region21
    $region20: #{tpu_custom_call.1} parent=1 // pred_region
      %66 = dma.done [#allocation3], 128
    $region21: #{tpu_custom_call.1} parent=1 // pred_fallthru
      _
    // Predicated region
    $region22: #{tpu_custom_call.1} parent=1 // pred_check
      _
    $region23: #{tpu_custom_call.1} parent=1 // pred_check_branch
      %68 = sbr.rel (0) target = $region25
    $region24: #{tpu_custom_call.1} parent=1 // pred_region
      %70 = dma.done [#allocation6], 256
    $region25: #{tpu_custom_call.1} parent=1 // pred_fallthru
      _
    // Predicated region
    $region26: #{tpu_custom_call.1} parent=1 // pred_check
      _
    $region27: #{tpu_custom_call.1} parent=1 // pred_check_branch
      %72 = sbr.rel (0) target = $region29
    $region28: #{tpu_custom_call.1} parent=1 // pred_region
      %74 = dma.done [#allocation6], 6144
    $region29: #{tpu_custom_call.1} parent=1 // pred_fallthru
      _
    // Predicated region
    $region30: #{tpu_custom_call.1} parent=1 // pred_check
      _
    $region31: #{tpu_custom_call.1} parent=1 // pred_check_branch
      %76 = sbr.rel (0) target = $region33
    $region32: #{tpu_custom_call.1} parent=1 // pred_region
      %78 = dma.done [#allocation9], 256
    $region33: #{tpu_custom_call.1} parent=1 // pred_fallthru
      _
    %v80 = vld [vmem:[#allocation2] sm:$0xff]
    %v81 = vpack.c.bf16 %v80, %v80
    %v82 = vld [vmem:[#allocation5] sm:$0xff]
    %v83 = vld [vmem:[#allocation5 + $0x8] sm:$0xff]
    %v86 = vunpack.c.l.b16 %v82
    %v87 = vunpack.c.h.b16 %v82
    %v88 = vunpack.c.l.b16 %v83
    %v89 = vunpack.c.h.b16 %v83
    %v90 = vpack.c.b16 %v88, %v86
    %v91 = vpack.c.b16 %v89, %v87
    %vm94 = vcmask 130048
    %v96 = vsel %vm94, %v81, 0
    %98 = vmatpush.bf16.msra.mxu0 0
    %99 = vmatpush.bf16.msra.mxu0 0
    %100 = vmatpush.bf16.msra.mxu0 0
    %101 = vmatpush.bf16.msra.mxu0 0
    %102 = vmatpush.bf16.msra.mxu0 0
    %103 = vmatpush.bf16.msra.mxu0 0
    %104 = vmatpush.bf16.msra.mxu0 0
    %105 = vmatpush.bf16.msra.mxu0 %v90
    %106 = vmatmul.bf16.gmra.mxu0 %v96
    %v107 = vpop.f32.mrf.mxu0
    %v108 = vadd.f32 0.0, %v107
    %v109 = vpop.f32.mrf.mxu0
    %110 = vdwg.mxu0
    %111 = vmatpush.bf16.msra.mxu0 0
    %112 = vmatpush.bf16.msra.mxu0 0
    %113 = vmatpush.bf16.msra.mxu0 0
    %114 = vmatpush.bf16.msra.mxu0 0
    %115 = vmatpush.bf16.msra.mxu0 0
    %116 = vmatpush.bf16.msra.mxu0 0
    %117 = vmatpush.bf16.msra.mxu0 0
    %118 = vmatpush.bf16.msra.mxu0 %v91
    %119 = vmatmul.bf16.gmra.mxu0 %v96
    %v120 = vpop.f32.mrf.mxu0
    %v121 = vadd.f32 0.0, %v120
    %v122 = vpop.f32.mrf.mxu0
    %123 = vdwg.mxu0
    %v124 = vld [vmem:[#allocation8] sm:$0xf]
    %v125 = vrot.slane %v108, 4
    %v126 = vadd.f32 %v108, %v125
    %v127 = vrot.slane %v126, 2
    %v128 = vadd.f32 %v126, %v127
    %v129 = vrot.slane %v128, 1
    %v130 = vadd.f32 %v128, %v129
    %v131 = vrot.slane %v121, 4
    %v132 = vadd.f32 %v121, %v131
    %v133 = vrot.slane %v132, 2
    %v134 = vadd.f32 %v132, %v133
    %v135 = vrot.slane %v134, 1
    %v136 = vadd.f32 %v134, %v135
    %v137 = vrcp.pop 8.0
    %v138 = vmul.f32 8.0, %v137
    %v139 = vsub.f32 1.0, %v138
    %v140 = vmul.f32 %v137, %v139
    %v141 = vadd.f32 %v137, %v140
    %vm142 = vweird.f32 %v137
    %v143 = vsel %vm142, %v137, %v141
    %v144 = vmul.f32 %v130, %v143
    %v145 = vmul.f32 %v136, %v143
    %v146 = vmul.f32 %v108, %v108
    %v147 = vmul.f32 %v121, %v121
    %v148 = vrot.slane %v146, 4
    %v149 = vadd.f32 %v146, %v148
    %v150 = vrot.slane %v149, 2
    %v151 = vadd.f32 %v149, %v150
    %v152 = vrot.slane %v151, 1
    %v153 = vadd.f32 %v151, %v152
    %v154 = vrot.slane %v147, 4
    %v155 = vadd.f32 %v147, %v154
    %v156 = vrot.slane %v155, 2
    %v157 = vadd.f32 %v155, %v156
    %v158 = vrot.slane %v157, 1
    %v159 = vadd.f32 %v157, %v158
    %v160 = vmul.f32 %v153, %v143
    %v161 = vmul.f32 %v159, %v143
    %v162 = vmul.f32 %v144, %v144
    %v163 = vmul.f32 %v145, %v145
    %v164 = vsub.f32 %v160, %v162
    %v165 = vsub.f32 %v161, %v163
    %v166 = vadd.f32 %v164, 1e-05
    %v167 = vadd.f32 %v165, 1e-05
    %v168 = vrsqrt.pop %v166
    %v169 = vmul.f32 %v168, %v166
    %v170 = vmul.f32 %v169, %v168
    %v171 = vmul.f32 0.5, %v170
    %v172 = vsub.f32 1.5, %v171
    %v173 = vmul.f32 %v168, %v172
    %vm174 = vweird.f32 %v166
    %vm175 = vweird.f32 %v168
    %vm176 = vmor %vm174, %vm175
    %v177 = vsel %vm176, %v168, %v173
    %v178 = vrsqrt.pop %v167
    %v179 = vmul.f32 %v178, %v167
    %v180 = vmul.f32 %v179, %v178
    %v181 = vmul.f32 0.5, %v180
    %v182 = vsub.f32 1.5, %v181
    %v183 = vmul.f32 %v178, %v182
    %vm184 = vweird.f32 %v167
    %vm185 = vweird.f32 %v178
    %vm186 = vmor %vm184, %vm185
    %v187 = vsel %vm186, %v178, %v183
    %v190 = vrot.slane %v187, 6
    %vm191 = vcmask 1041408
    %v192 = vsel %vm191, %v177, %v190
    %v194 = vmul.f32 %v124, %v192
    %v196 = vperm.slane %v194, 0
    %v197 = vperm.slane %v194, 2
    %v200 = vmul.f32 %v144, %v196
    %v201 = vmul.f32 %v145, %v197
    %v204 = vrot.slane %v201, 6
    %v205 = vsel %vm191, %v200, %v204
    %v206 = vrot.slane %v205, 7
    %v208 = vsub.f32 %v124, %v206
    %v209 = vperm.slane %v196, 0
    %v210 = vperm.slane %v197, 0
    %v211 = vmul.f32 %v108, %v209
    %v212 = vmul.f32 %v121, %v210
    %v214 = vperm.slane %v208, 1
    %v215 = vperm.slane %v208, 3
    %v218 = vperm.slane %v214, 1
    %v219 = vperm.slane %v215, 1
    %v220 = vadd.f32 %v211, %v218
    %v221 = vadd.f32 %v212, %v219
    %v222 = vmul.f32 %v221, 0.5
    %v223 = vtanh.pop %v222
    %v224 = vmul.f32 %v223, 0.5
    %v225 = vadd.f32 %v224, 0.5
    %v226 = vmul.f32 %v220, %v225
    %v227 = vpack.c.bf16 %v226, %v226
    %v228 = vld [vmem:[#allocation7] sm:$0xff]
    %v229 = vld [vmem:[#allocation7 + $0x8] sm:$0xff]
    %v230 = vld [vmem:[#allocation7 + $0x10] sm:$0xff]
    %v231 = vld [vmem:[#allocation7 + $0x18] sm:$0xff]
    %v232 = vld [vmem:[#allocation7 + $0x20] sm:$0xff]
    %v233 = vld [vmem:[#allocation7 + $0x28] sm:$0xff]
    %v234 = vld [vmem:[#allocation7 + $0x30] sm:$0xff]
    %v235 = vld [vmem:[#allocation7 + $0x38] sm:$0xff]
    %v236 = vld [vmem:[#allocation7 + $0x40] sm:$0xff]
    %v237 = vld [vmem:[#allocation7 + $0x48] sm:$0xff]
    %v238 = vld [vmem:[#allocation7 + $0x50] sm:$0xff]
    %v239 = vld [vmem:[#allocation7 + $0x58] sm:$0xff]
    %v240 = vld [vmem:[#allocation7 + $0x60] sm:$0xff]
    %v241 = vld [vmem:[#allocation7 + $0x68] sm:$0xff]
    %v242 = vld [vmem:[#allocation7 + $0x70] sm:$0xff]
    %v243 = vld [vmem:[#allocation7 + $0x78] sm:$0xff]
    %v260 = vunpack.c.l.b16 %v228
    %v261 = vunpack.c.h.b16 %v228
    %v262 = vunpack.c.l.b16 %v229
    %v263 = vunpack.c.h.b16 %v229
    %v264 = vunpack.c.l.b16 %v230
    %v265 = vunpack.c.h.b16 %v230
    %v266 = vunpack.c.l.b16 %v231
    %v267 = vunpack.c.h.b16 %v231
    %v268 = vunpack.c.l.b16 %v232
    %v269 = vunpack.c.h.b16 %v232
    %v270 = vunpack.c.l.b16 %v233
    %v271 = vunpack.c.h.b16 %v233
    %v272 = vunpack.c.l.b16 %v234
    %v273 = vunpack.c.h.b16 %v234
    %v274 = vunpack.c.l.b16 %v235
    %v275 = vunpack.c.h.b16 %v235
    %v276 = vunpack.c.l.b16 %v236
    %v277 = vunpack.c.h.b16 %v236
    %v278 = vunpack.c.l.b16 %v237
    %v279 = vunpack.c.h.b16 %v237
    %v280 = vunpack.c.l.b16 %v238
    %v281 = vunpack.c.h.b16 %v238
    %v282 = vunpack.c.l.b16 %v239
    %v283 = vunpack.c.h.b16 %v239
    %v284 = vunpack.c.l.b16 %v240
    %v285 = vunpack.c.h.b16 %v240
    %v286 = vunpack.c.l.b16 %v241
    %v287 = vunpack.c.h.b16 %v241
    %v288 = vunpack.c.l.b16 %v242
    %v289 = vunpack.c.h.b16 %v242
    %v290 = vunpack.c.l.b16 %v243
    %v291 = vunpack.c.h.b16 %v243
    %v292 = vpack.c.b16 %v262, %v260
    %v293 = vpack.c.b16 %v263, %v261
    %v294 = vpack.c.b16 %v266, %v264
    %v295 = vpack.c.b16 %v267, %v265
    %v296 = vpack.c.b16 %v270, %v268
    %v297 = vpack.c.b16 %v271, %v269
    %v298 = vpack.c.b16 %v274, %v272
    %v299 = vpack.c.b16 %v275, %v273
    %v300 = vpack.c.b16 %v278, %v276
    %v301 = vpack.c.b16 %v279, %v277
    %v302 = vpack.c.b16 %v282, %v280
    %v303 = vpack.c.b16 %v283, %v281
    %v304 = vpack.c.b16 %v286, %v284
    %v305 = vpack.c.b16 %v287, %v285
    %v306 = vpack.c.b16 %v290, %v288
    %v307 = vpack.c.b16 %v291, %v289
    %324 = vmatpush.bf16.msra.mxu0 %v306
    %325 = vmatpush.bf16.msra.mxu0 %v304
    %326 = vmatpush.bf16.msra.mxu0 %v302
    %327 = vmatpush.bf16.msra.mxu0 %v300
    %328 = vmatpush.bf16.msra.mxu0 %v298
    %329 = vmatpush.bf16.msra.mxu0 %v296
    %330 = vmatpush.bf16.msra.mxu0 %v294
    %331 = vmatpush.bf16.msra.mxu0 %v292
    %332 = vmatmul.bf16.gmra.mxu0 %v227
    %v333 = vpop.f32.mrf.mxu0
    %v334 = vadd.f32 0.0, %v333
    %v335 = vpop.f32.mrf.mxu0
    %336 = vdwg.mxu0
    %337 = vmatpush.bf16.msra.mxu0 %v307
    %338 = vmatpush.bf16.msra.mxu0 %v305
    %339 = vmatpush.bf16.msra.mxu0 %v303
    %340 = vmatpush.bf16.msra.mxu0 %v301
    %341 = vmatpush.bf16.msra.mxu0 %v299
    %342 = vmatpush.bf16.msra.mxu0 %v297
    %343 = vmatpush.bf16.msra.mxu0 %v295
    %344 = vmatpush.bf16.msra.mxu0 %v293
    %345 = vmatmul.bf16.gmra.mxu0 %v227
    %v346 = vpop.f32.mrf.mxu0
    %v347 = vadd.f32 0.0, %v346
    %v348 = vpop.f32.mrf.mxu0
    %349 = vdwg.mxu0
    %s350 = scalar_lea.vmem [#allocation8], 4
    %v351 = vld [vmem:[%s350] sm:$0xf]
    %v352 = vrot.slane %v334, 4
    %v353 = vadd.f32 %v334, %v352
    %v354 = vrot.slane %v353, 2
    %v355 = vadd.f32 %v353, %v354
    %v356 = vrot.slane %v355, 1
    %v357 = vadd.f32 %v355, %v356
    %v358 = vrot.slane %v347, 4
    %v359 = vadd.f32 %v347, %v358
    %v360 = vrot.slane %v359, 2
    %v361 = vadd.f32 %v359, %v360
    %v362 = vrot.slane %v361, 1
    %v363 = vadd.f32 %v361, %v362
    %v364 = vmul.f32 %v357, %v143
    %v365 = vmul.f32 %v363, %v143
    %v366 = vmul.f32 %v334, %v334
    %v367 = vmul.f32 %v347, %v347
    %v368 = vrot.slane %v366, 4
    %v369 = vadd.f32 %v366, %v368
    %v370 = vrot.slane %v369, 2
    %v371 = vadd.f32 %v369, %v370
    %v372 = vrot.slane %v371, 1
    %v373 = vadd.f32 %v371, %v372
    %v374 = vrot.slane %v367, 4
    %v375 = vadd.f32 %v367, %v374
    %v376 = vrot.slane %v375, 2
    %v377 = vadd.f32 %v375, %v376
    %v378 = vrot.slane %v377, 1
    %v379 = vadd.f32 %v377, %v378
    %v380 = vmul.f32 %v373, %v143
    %v381 = vmul.f32 %v379, %v143
    %v382 = vmul.f32 %v364, %v364
    %v383 = vmul.f32 %v365, %v365
    %v384 = vsub.f32 %v380, %v382
    %v385 = vsub.f32 %v381, %v383
    %v386 = vadd.f32 %v384, 1e-05
    %v387 = vadd.f32 %v385, 1e-05
    %v388 = vrsqrt.pop %v386
    %v389 = vmul.f32 %v388, %v386
    %v390 = vmul.f32 %v389, %v388
    %v391 = vmul.f32 0.5, %v390
    %v392 = vsub.f32 1.5, %v391
    %v393 = vmul.f32 %v388, %v392
    %vm394 = vweird.f32 %v386
    %vm395 = vweird.f32 %v388
    %vm396 = vmor %vm394, %vm395
    %v397 = vsel %vm396, %v388, %v393
    %v398 = vrsqrt.pop %v387
    %v399 = vmul.f32 %v398, %v387
    %v400 = vmul.f32 %v399, %v398
    %v401 = vmul.f32 0.5, %v400
    %v402 = vsub.f32 1.5, %v401
    %v403 = vmul.f32 %v398, %v402
    %vm404 = vweird.f32 %v387
    %vm405 = vweird.f32 %v398
    %vm406 = vmor %vm404, %vm405
    %v407 = vsel %vm406, %v398, %v403
    %v410 = vrot.slane %v407, 6
    %v411 = vsel %vm191, %v397, %v410
    %v413 = vmul.f32 %v351, %v411
    %v415 = vperm.slane %v413, 0
    %v416 = vperm.slane %v413, 2
    %v419 = vmul.f32 %v364, %v415
    %v420 = vmul.f32 %v365, %v416
    %v423 = vrot.slane %v420, 6
    %v424 = vsel %vm191, %v419, %v423
    %v425 = vrot.slane %v424, 7
    %v427 = vsub.f32 %v351, %v425
    %v428 = vperm.slane %v415, 0
    %v429 = vperm.slane %v416, 0
    %v430 = vmul.f32 %v334, %v428
    %v431 = vmul.f32 %v347, %v429
    %v433 = vperm.slane %v427, 1
    %v434 = vperm.slane %v427, 3
    %v437 = vperm.slane %v433, 1
    %v438 = vperm.slane %v434, 1
    %v439 = vadd.f32 %v430, %v437
    %v440 = vadd.f32 %v431, %v438
    %v441 = vmul.f32 %v440, 0.5
    %v442 = vtanh.pop %v441
    %v443 = vmul.f32 %v442, 0.5
    %v444 = vadd.f32 %v443, 0.5
    %v445 = vmul.f32 %v439, %v444
    %v446 = vadd.f32 %v226, %v445
    %v447 = vmul.f32 %v446, 0.70710677
    %v448 = vpack.c.bf16 %v447, %v447
    %s449 = scalar_lea.vmem [#allocation7], 128
    %v450 = vld [vmem:[%s449] sm:$0xff]
    %v451 = vld [vmem:[%s449 + $0x8] sm:$0xff]
    %v452 = vld [vmem:[%s449 + $0x10] sm:$0xff]
    %v453 = vld [vmem:[%s449 + $0x18] sm:$0xff]
    %v454 = vld [vmem:[%s449 + $0x20] sm:$0xff]
    %v455 = vld [vmem:[%s449 + $0x28] sm:$0xff]
    %v456 = vld [vmem:[%s449 + $0x30] sm:$0xff]
    %v457 = vld [vmem:[%s449 + $0x38] sm:$0xff]
    %v458 = vld [vmem:[%s449 + $0x40] sm:$0xff]
    %v459 = vld [vmem:[%s449 + $0x48] sm:$0xff]
    %v460 = vld [vmem:[%s449 + $0x50] sm:$0xff]
    %v461 = vld [vmem:[%s449 + $0x58] sm:$0xff]
    %v462 = vld [vmem:[%s449 + $0x60] sm:$0xff]
    %v463 = vld [vmem:[%s449 + $0x68] sm:$0xff]
    %v464 = vld [vmem:[%s449 + $0x70] sm:$0xff]
    %v465 = vld [vmem:[%s449 + $0x78] sm:$0xff]
    %v482 = vunpack.c.l.b16 %v450
    %v483 = vunpack.c.h.b16 %v450
    %v484 = vunpack.c.l.b16 %v451
    %v485 = vunpack.c.h.b16 %v451
    %v486 = vunpack.c.l.b16 %v452
    %v487 = vunpack.c.h.b16 %v452
    %v488 = vunpack.c.l.b16 %v453
    %v489 = vunpack.c.h.b16 %v453
    %v490 = vunpack.c.l.b16 %v454
    %v491 = vunpack.c.h.b16 %v454
    %v492 = vunpack.c.l.b16 %v455
    %v493 = vunpack.c.h.b16 %v455
    %v494 = vunpack.c.l.b16 %v456
    %v495 = vunpack.c.h.b16 %v456
    %v496 = vunpack.c.l.b16 %v457
    %v497 = vunpack.c.h.b16 %v457
    %v498 = vunpack.c.l.b16 %v458
    %v499 = vunpack.c.h.b16 %v458
    %v500 = vunpack.c.l.b16 %v459
    %v501 = vunpack.c.h.b16 %v459
    %v502 = vunpack.c.l.b16 %v460
    %v503 = vunpack.c.h.b16 %v460
    %v504 = vunpack.c.l.b16 %v461
    %v505 = vunpack.c.h.b16 %v461
    %v506 = vunpack.c.l.b16 %v462
    %v507 = vunpack.c.h.b16 %v462
    %v508 = vunpack.c.l.b16 %v463
    %v509 = vunpack.c.h.b16 %v463
    %v510 = vunpack.c.l.b16 %v464
    %v511 = vunpack.c.h.b16 %v464
    %v512 = vunpack.c.l.b16 %v465
    %v513 = vunpack.c.h.b16 %v465
    %v514 = vpack.c.b16 %v484, %v482
    %v515 = vpack.c.b16 %v485, %v483
    %v516 = vpack.c.b16 %v488, %v486
    %v517 = vpack.c.b16 %v489, %v487
    %v518 = vpack.c.b16 %v492, %v490
    %v519 = vpack.c.b16 %v493, %v491
    %v520 = vpack.c.b16 %v496, %v494
    %v521 = vpack.c.b16 %v497, %v495
    %v522 = vpack.c.b16 %v500, %v498
    %v523 = vpack.c.b16 %v501, %v499
    %v524 = vpack.c.b16 %v504, %v502
    %v525 = vpack.c.b16 %v505, %v503
    %v526 = vpack.c.b16 %v508, %v506
    %v527 = vpack.c.b16 %v509, %v507
    %v528 = vpack.c.b16 %v512, %v510
    %v529 = vpack.c.b16 %v513, %v511
    %546 = vmatpush.bf16.msra.mxu0 %v528
    %547 = vmatpush.bf16.msra.mxu0 %v526
    %548 = vmatpush.bf16.msra.mxu0 %v524
    %549 = vmatpush.bf16.msra.mxu0 %v522
    %550 = vmatpush.bf16.msra.mxu0 %v520
    %551 = vmatpush.bf16.msra.mxu0 %v518
    %552 = vmatpush.bf16.msra.mxu0 %v516
    %553 = vmatpush.bf16.msra.mxu0 %v514
    %554 = vmatmul.bf16.gmra.mxu0 %v448
    %v555 = vpop.f32.mrf.mxu0
    %v556 = vadd.f32 0.0, %v555
    %v557 = vpop.f32.mrf.mxu0
    %558 = vdwg.mxu0
    %559 = vmatpush.bf16.msra.mxu0 %v529
    %560 = vmatpush.bf16.msra.mxu0 %v527
    %561 = vmatpush.bf16.msra.mxu0 %v525
    %562 = vmatpush.bf16.msra.mxu0 %v523
    %563 = vmatpush.bf16.msra.mxu0 %v521
    %564 = vmatpush.bf16.msra.mxu0 %v519
    %565 = vmatpush.bf16.msra.mxu0 %v517
    %566 = vmatpush.bf16.msra.mxu0 %v515
    %567 = vmatmul.bf16.gmra.mxu0 %v448
    %v568 = vpop.f32.mrf.mxu0
    %v569 = vadd.f32 0.0, %v568
    %v570 = vpop.f32.mrf.mxu0
    %571 = vdwg.mxu0
    %s572 = scalar_lea.vmem [#allocation8], 8
    %v573 = vld [vmem:[%s572] sm:$0xf]
    %v574 = vrot.slane %v556, 4
    %v575 = vadd.f32 %v556, %v574
    %v576 = vrot.slane %v575, 2
    %v577 = vadd.f32 %v575, %v576
    %v578 = vrot.slane %v577, 1
    %v579 = vadd.f32 %v577, %v578
    %v580 = vrot.slane %v569, 4
    %v581 = vadd.f32 %v569, %v580
    %v582 = vrot.slane %v581, 2
    %v583 = vadd.f32 %v581, %v582
    %v584 = vrot.slane %v583, 1
    %v585 = vadd.f32 %v583, %v584
    %v586 = vmul.f32 %v579, %v143
    %v587 = vmul.f32 %v585, %v143
    %v588 = vmul.f32 %v556, %v556
    %v589 = vmul.f32 %v569, %v569
    %v590 = vrot.slane %v588, 4
    %v591 = vadd.f32 %v588, %v590
    %v592 = vrot.slane %v591, 2
    %v593 = vadd.f32 %v591, %v592
    %v594 = vrot.slane %v593, 1
    %v595 = vadd.f32 %v593, %v594
    %v596 = vrot.slane %v589, 4
    %v597 = vadd.f32 %v589, %v596
    %v598 = vrot.slane %v597, 2
    %v599 = vadd.f32 %v597, %v598
    %v600 = vrot.slane %v599, 1
    %v601 = vadd.f32 %v599, %v600
    %v602 = vmul.f32 %v595, %v143
    %v603 = vmul.f32 %v601, %v143
    %v604 = vmul.f32 %v586, %v586
    %v605 = vmul.f32 %v587, %v587
    %v606 = vsub.f32 %v602, %v604
    %v607 = vsub.f32 %v603, %v605
    %v608 = vadd.f32 %v606, 1e-05
    %v609 = vadd.f32 %v607, 1e-05
    %v610 = vrsqrt.pop %v608
    %v611 = vmul.f32 %v610, %v608
    %v612 = vmul.f32 %v611, %v610
    %v613 = vmul.f32 0.5, %v612
    %v614 = vsub.f32 1.5, %v613
    %v615 = vmul.f32 %v610, %v614
    %vm616 = vweird.f32 %v608
    %vm617 = vweird.f32 %v610
    %vm618 = vmor %vm616, %vm617
    %v619 = vsel %vm618, %v610, %v615
    %v620 = vrsqrt.pop %v609
    %v621 = vmul.f32 %v620, %v609
    %v622 = vmul.f32 %v621, %v620
    %v623 = vmul.f32 0.5, %v622
    %v624 = vsub.f32 1.5, %v623
    %v625 = vmul.f32 %v620, %v624
    %vm626 = vweird.f32 %v609
    %vm627 = vweird.f32 %v620
    %vm628 = vmor %vm626, %vm627
    %v629 = vsel %vm628, %v620, %v625
    %v632 = vrot.slane %v629, 6
    %v633 = vsel %vm191, %v619, %v632
    %v635 = vmul.f32 %v573, %v633
    %v637 = vperm.slane %v635, 0
    %v638 = vperm.slane %v635, 2
    %v641 = vmul.f32 %v586, %v637
    %v642 = vmul.f32 %v587, %v638
    %v645 = vrot.slane %v642, 6
    %v646 = vsel %vm191, %v641, %v645
    %v647 = vrot.slane %v646, 7
    %v649 = vsub.f32 %v573, %v647
    %v650 = vperm.slane %v637, 0
    %v651 = vperm.slane %v638, 0
    %v652 = vmul.f32 %v556, %v650
    %v653 = vmul.f32 %v569, %v651
    %v655 = vperm.slane %v649, 1
    %v656 = vperm.slane %v649, 3
    %v659 = vperm.slane %v655, 1
    %v660 = vperm.slane %v656, 1
    %v661 = vadd.f32 %v652, %v659
    %v662 = vadd.f32 %v653, %v660
    %v663 = vmul.f32 %v662, 0.5
    %v664 = vtanh.pop %v663
    %v665 = vmul.f32 %v664, 0.5
    %v666 = vadd.f32 %v665, 0.5
    %v667 = vmul.f32 %v661, %v666
    %v668 = vadd.f32 %v447, %v667
    %v669 = vmul.f32 %v668, 0.70710677
    %v670 = vpack.c.bf16 %v669, %v669
    %s671 = scalar_lea.vmem [#allocation7], 256
    %v672 = vld [vmem:[%s671] sm:$0xff]
    %v673 = vld [vmem:[%s671 + $0x8] sm:$0xff]
    %v674 = vld [vmem:[%s671 + $0x10] sm:$0xff]
    %v675 = vld [vmem:[%s671 + $0x18] sm:$0xff]
    %v676 = vld [vmem:[%s671 + $0x20] sm:$0xff]
    %v677 = vld [vmem:[%s671 + $0x28] sm:$0xff]
    %v678 = vld [vmem:[%s671 + $0x30] sm:$0xff]
    %v679 = vld [vmem:[%s671 + $0x38] sm:$0xff]
    %v680 = vld [vmem:[%s671 + $0x40] sm:$0xff]
    %v681 = vld [vmem:[%s671 + $0x48] sm:$0xff]
    %v682 = vld [vmem:[%s671 + $0x50] sm:$0xff]
    %v683 = vld [vmem:[%s671 + $0x58] sm:$0xff]
    %v684 = vld [vmem:[%s671 + $0x60] sm:$0xff]
    %v685 = vld [vmem:[%s671 + $0x68] sm:$0xff]
    %v686 = vld [vmem:[%s671 + $0x70] sm:$0xff]
    %v687 = vld [vmem:[%s671 + $0x78] sm:$0xff]
    %v704 = vunpack.c.l.b16 %v672
    %v705 = vunpack.c.h.b16 %v672
    %v706 = vunpack.c.l.b16 %v673
    %v707 = vunpack.c.h.b16 %v673
    %v708 = vunpack.c.l.b16 %v674
    %v709 = vunpack.c.h.b16 %v674
    %v710 = vunpack.c.l.b16 %v675
    %v711 = vunpack.c.h.b16 %v675
    %v712 = vunpack.c.l.b16 %v676
    %v713 = vunpack.c.h.b16 %v676
    %v714 = vunpack.c.l.b16 %v677
    %v715 = vunpack.c.h.b16 %v677
    %v716 = vunpack.c.l.b16 %v678
    %v717 = vunpack.c.h.b16 %v678
    %v718 = vunpack.c.l.b16 %v679
    %v719 = vunpack.c.h.b16 %v679
    %v720 = vunpack.c.l.b16 %v680
    %v721 = vunpack.c.h.b16 %v680
    %v722 = vunpack.c.l.b16 %v681
    %v723 = vunpack.c.h.b16 %v681
    %v724 = vunpack.c.l.b16 %v682
    %v725 = vunpack.c.h.b16 %v682
    %v726 = vunpack.c.l.b16 %v683
    %v727 = vunpack.c.h.b16 %v683
    %v728 = vunpack.c.l.b16 %v684
    %v729 = vunpack.c.h.b16 %v684
    %v730 = vunpack.c.l.b16 %v685
    %v731 = vunpack.c.h.b16 %v685
    %v732 = vunpack.c.l.b16 %v686
    %v733 = vunpack.c.h.b16 %v686
    %v734 = vunpack.c.l.b16 %v687
    %v735 = vunpack.c.h.b16 %v687
    %v736 = vpack.c.b16 %v706, %v704
    %v737 = vpack.c.b16 %v707, %v705
    %v738 = vpack.c.b16 %v710, %v708
    %v739 = vpack.c.b16 %v711, %v709
    %v740 = vpack.c.b16 %v714, %v712
    %v741 = vpack.c.b16 %v715, %v713
    %v742 = vpack.c.b16 %v718, %v716
    %v743 = vpack.c.b16 %v719, %v717
    %v744 = vpack.c.b16 %v722, %v720
    %v745 = vpack.c.b16 %v723, %v721
    %v746 = vpack.c.b16 %v726, %v724
    %v747 = vpack.c.b16 %v727, %v725
    %v748 = vpack.c.b16 %v730, %v728
    %v749 = vpack.c.b16 %v731, %v729
    %v750 = vpack.c.b16 %v734, %v732
    %v751 = vpack.c.b16 %v735, %v733
    %768 = vmatpush.bf16.msra.mxu0 %v750
    %769 = vmatpush.bf16.msra.mxu0 %v748
    %770 = vmatpush.bf16.msra.mxu0 %v746
    %771 = vmatpush.bf16.msra.mxu0 %v744
    %772 = vmatpush.bf16.msra.mxu0 %v742
    %773 = vmatpush.bf16.msra.mxu0 %v740
    %774 = vmatpush.bf16.msra.mxu0 %v738
    %775 = vmatpush.bf16.msra.mxu0 %v736
    %776 = vmatmul.bf16.gmra.mxu0 %v670
    %v777 = vpop.f32.mrf.mxu0
    %v778 = vadd.f32 0.0, %v777
    %v779 = vpop.f32.mrf.mxu0
    %780 = vdwg.mxu0
    %781 = vmatpush.bf16.msra.mxu0 %v751
    %782 = vmatpush.bf16.msra.mxu0 %v749
    %783 = vmatpush.bf16.msra.mxu0 %v747
    %784 = vmatpush.bf16.msra.mxu0 %v745
    %785 = vmatpush.bf16.msra.mxu0 %v743
    %786 = vmatpush.bf16.msra.mxu0 %v741
    %787 = vmatpush.bf16.msra.mxu0 %v739
    %788 = vmatpush.bf16.msra.mxu0 %v737
    %789 = vmatmul.bf16.gmra.mxu0 %v670
    %v790 = vpop.f32.mrf.mxu0
    %v791 = vadd.f32 0.0, %v790
    %v792 = vpop.f32.mrf.mxu0
    %793 = vdwg.mxu0
    %s794 = scalar_lea.vmem [#allocation8], 12
    %v795 = vld [vmem:[%s794] sm:$0xf]
    %v796 = vrot.slane %v778, 4
    %v797 = vadd.f32 %v778, %v796
    %v798 = vrot.slane %v797, 2
    %v799 = vadd.f32 %v797, %v798
    %v800 = vrot.slane %v799, 1
    %v801 = vadd.f32 %v799, %v800
    %v802 = vrot.slane %v791, 4
    %v803 = vadd.f32 %v791, %v802
    %v804 = vrot.slane %v803, 2
    %v805 = vadd.f32 %v803, %v804
    %v806 = vrot.slane %v805, 1
    %v807 = vadd.f32 %v805, %v806
    %v808 = vmul.f32 %v801, %v143
    %v809 = vmul.f32 %v807, %v143
    %v810 = vmul.f32 %v778, %v778
    %v811 = vmul.f32 %v791, %v791
    %v812 = vrot.slane %v810, 4
    %v813 = vadd.f32 %v810, %v812
    %v814 = vrot.slane %v813, 2
    %v815 = vadd.f32 %v813, %v814
    %v816 = vrot.slane %v815, 1
    %v817 = vadd.f32 %v815, %v816
    %v818 = vrot.slane %v811, 4
    %v819 = vadd.f32 %v811, %v818
    %v820 = vrot.slane %v819, 2
    %v821 = vadd.f32 %v819, %v820
    %v822 = vrot.slane %v821, 1
    %v823 = vadd.f32 %v821, %v822
    %v824 = vmul.f32 %v817, %v143
    %v825 = vmul.f32 %v823, %v143
    %v826 = vmul.f32 %v808, %v808
    %v827 = vmul.f32 %v809, %v809
    %v828 = vsub.f32 %v824, %v826
    %v829 = vsub.f32 %v825, %v827
    %v830 = vadd.f32 %v828, 1e-05
    %v831 = vadd.f32 %v829, 1e-05
    %v832 = vrsqrt.pop %v830
    %v833 = vmul.f32 %v832, %v830
    %v834 = vmul.f32 %v833, %v832
    %v835 = vmul.f32 0.5, %v834
    %v836 = vsub.f32 1.5, %v835
    %v837 = vmul.f32 %v832, %v836
    %vm838 = vweird.f32 %v830
    %vm839 = vweird.f32 %v832
    %vm840 = vmor %vm838, %vm839
    %v841 = vsel %vm840, %v832, %v837
    %v842 = vrsqrt.pop %v831
    %v843 = vmul.f32 %v842, %v831
    %v844 = vmul.f32 %v843, %v842
    %v845 = vmul.f32 0.5, %v844
    %v846 = vsub.f32 1.5, %v845
    %v847 = vmul.f32 %v842, %v846
    %vm848 = vweird.f32 %v831
    %vm849 = vweird.f32 %v842
    %vm850 = vmor %vm848, %vm849
    %v851 = vsel %vm850, %v842, %v847
    %v854 = vrot.slane %v851, 6
    %v855 = vsel %vm191, %v841, %v854
    %v857 = vmul.f32 %v795, %v855
    %v859 = vperm.slane %v857, 0
    %v860 = vperm.slane %v857, 2
    %v863 = vmul.f32 %v808, %v859
    %v864 = vmul.f32 %v809, %v860
    %v867 = vrot.slane %v864, 6
    %v868 = vsel %vm191, %v863, %v867
    %v869 = vrot.slane %v868, 7
    %v871 = vsub.f32 %v795, %v869
    %v872 = vperm.slane %v859, 0
    %v873 = vperm.slane %v860, 0
    %v874 = vmul.f32 %v778, %v872
    %v875 = vmul.f32 %v791, %v873
    %v877 = vperm.slane %v871, 1
    %v878 = vperm.slane %v871, 3
    %v881 = vperm.slane %v877, 1
    %v882 = vperm.slane %v878, 1
    %v883 = vadd.f32 %v874, %v881
    %v884 = vadd.f32 %v875, %v882
    %v885 = vmul.f32 %v884, 0.5
    %v886 = vtanh.pop %v885
    %v887 = vmul.f32 %v886, 0.5
    %v888 = vadd.f32 %v887, 0.5
    %v889 = vmul.f32 %v883, %v888
    %v890 = vadd.f32 %v669, %v889
    %v891 = vmul.f32 %v890, 0.70710677
    %892 = vst.msk [vmem:[#allocation10] sm:$0xff] %vm94, %v891
    // Predicated region
    $region34: #{tpu_custom_call.1} parent=1 // pred_check
      _
    $region35: #{tpu_custom_call.1} parent=1 // pred_check_branch
      %894 = sbr.rel (0) target = $region37
    $region36: #{tpu_custom_call.1} parent=1 // pred_region
      %896 = vsyncadd [#allocation4], 0
      %s898 = sshll.u32 [#allocation10], 4
      %s899 = int_to_ptr.vmem [resolvable:$true] %s898
      %s900 = sshll.u32 %s4, 4
      %s901 = int_to_ptr.hbm [resolvable:$true] %s900
      %903 = dma.vmem_to_hbm [thread:$0]  %s899, 128, %s901, [#allocation4]
    $region37: #{tpu_custom_call.1} parent=1 // pred_fallthru
      _
    // Predicated region
    $region38: #{tpu_custom_call.1} parent=1 // pred_check
      _
    $region39: #{tpu_custom_call.1} parent=1 // pred_check_branch
      %905 = sbr.rel (0) target = $region41
    $region40: #{tpu_custom_call.1} parent=1 // pred_region
      %907 = dma.done [#allocation4], 128
    $region41: #{tpu_custom_call.1} parent=1 // pred_fallthru
      _
    %908 = vsyncpa [#allocation3], 1
    %909 = vsyncpa [#allocation6], 1
    %910 = vsyncpa [#allocation9], 1
    %911 = vsyncpa [#allocation4], 1

</llo_original>
